<compile_context>
chip_gen: v7x
topology: tpu7x:2x2x1
jax: 0.10.0
libtpu: 0.0.40
codegen_flags: <defaults>
</compile_context>

<pallas_src>
import functools
import math

import jax
import jax.numpy as jnp
from jax.experimental import pallas as pl
from jax.experimental.pallas import tpu as pltpu


def ncst_block_kernel(x_ref, mod_ref, wqkv_ref, bqkv_ref, wproj_ref, bproj_ref,
                      w1_ref, b1_ref, w2_ref, b2_ref, out_ref, *,
                      dim, n_heads, bt, seq):
    head_dim = dim // n_heads
    eps = 1e-6
    rows = bt * seq

    x = x_ref[...].astype(jnp.float32)          # (bt, T, D)
    m = mod_ref[...].astype(jnp.float32)        # (bt, 6, 1, D)

    # Leading-axis selects (free) instead of lane-axis slices of a (1, 6*D) row.
    scale_attn = m[:, 0]                        # (bt, 1, D)
    shift_attn = m[:, 1]
    gate_attn = m[:, 2]
    scale_mlp = m[:, 3]
    shift_mlp = m[:, 4]
    gate_mlp = m[:, 5]

    def layernorm(h):
        # LayerNorm(dim, elementwise_affine=False, eps=1e-6): biased variance.
        mu = jnp.mean(h, axis=-1, keepdims=True)
        var = jnp.mean(jnp.square(h - mu), axis=-1, keepdims=True)
        return (h - mu) * jax.lax.rsqrt(var + eps)

    # ---------------- attention branch ----------------
    h = scale_attn * layernorm(x) + shift_attn                       # (bt, T, D)
    h2d = h.reshape(rows, dim).astype(jnp.bfloat16)                  # batched rows
    qkv = jnp.dot(h2d, wqkv_ref[...],
                  preferred_element_type=jnp.float32) + bqkv_ref[...]  # (rows, 3D) f32
    qkv = qkv.reshape(bt, seq, 3 * dim)
    q = qkv[..., 0 * dim:1 * dim].astype(jnp.bfloat16)
    k = qkv[..., 1 * dim:2 * dim].astype(jnp.bfloat16)
    v = qkv[..., 2 * dim:3 * dim].astype(jnp.bfloat16)

    inv_sqrt_d = 1.0 / math.sqrt(head_dim)
    # Accumulate each head's output directly through its slice of the output
    # projection — no (T, D) concatenate, no extra relayouts.
    proj_acc = jnp.zeros((rows, dim), jnp.float32)
    for hh in range(n_heads):                                        # static unroll
        sl = slice(hh * head_dim, (hh + 1) * head_dim)
        qh, kh, vh = q[..., sl], k[..., sl], v[..., sl]              # (bt, T, hd)
        s = jnp.einsum('bqd,bkd->bqk', qh, kh,
                       preferred_element_type=jnp.float32) * inv_sqrt_d
        s = s - jnp.max(s, axis=-1, keepdims=True)
        p = jnp.exp(s)
        p = p * pl.reciprocal(jnp.sum(p, axis=-1, keepdims=True), approx=True)
        oh = jnp.einsum('bqk,bkd->bqd', p.astype(jnp.bfloat16), vh,
                        preferred_element_type=jnp.float32)          # (bt, T, hd)
        proj_acc = proj_acc + jnp.dot(
            oh.reshape(rows, head_dim).astype(jnp.bfloat16), wproj_ref[sl, :],
            preferred_element_type=jnp.float32)
    attn = (proj_acc + bproj_ref[...]).reshape(bt, seq, dim)
    x1 = x + gate_attn * attn

    # ---------------- MLP branch ----------------
    g = scale_mlp * layernorm(x1) + shift_mlp                        # (bt, T, D)
    g2d = g.reshape(rows, dim).astype(jnp.bfloat16)
    mid = jnp.dot(g2d, w1_ref[...],
                  preferred_element_type=jnp.float32) + b1_ref[...]   # (rows, hidden)
    # tanh-approx GELU: transcendental goes to the EUP slot instead of a long
    # VPU polynomial on the (rows, 4D) tensor.
    c = math.sqrt(2.0 / math.pi)
    mid = 0.5 * mid * (1.0 + jnp.tanh(c * (mid + 0.044715 * mid * mid * mid)))
    mlp = jnp.dot(mid.astype(jnp.bfloat16), w2_ref[...],
                  preferred_element_type=jnp.float32) + b2_ref[...]   # (rows, D)

    out_ref[...] = (x1 + gate_mlp * mlp.reshape(bt, seq, dim)).astype(out_ref.dtype)


def ncst_block(x, noise_level, params, *, n_heads, target_rows=256):
    B, T, D = x.shape
    hidden = params["w1"].shape[1]

    # adaLN embedding lookup = glue in plain JAX (data-dependent gather).
    # Shape (B, 6, 1, D): the six modulation vectors are selected with leading
    # axis indices inside the kernel (no lane-axis slicing).
    mod = params["emb"][noise_level].reshape(B, 6, 1, D)

    # Fold as many batch elements per grid step as possible while keeping
    # Bt * T around the MXU-friendly row target (and Bt | B).
    bt = 1
    for cand in range(1, B + 1):
        if B % cand == 0 and cand * T <= max(target_rows, T):
            bt = cand
    grid = (B // bt,)

    # bf16 weights: MXU-native, half the HBM/VMEM bytes.
    as_bf16 = lambda name: params[name].astype(jnp.bfloat16)

    # Whole-operand weights/biases resident in VMEM once (constant across the
    # grid, so no double-buffering of the weight bytes).
    vmem_full = pl.BlockSpec(memory_space=pltpu.MemorySpace.VMEM)

    # Explicit VMEM budget: weights (bf16) + biases + activation slabs + headroom.
    weight_bytes = 2 * (D * 3 * D + D * D + D * hidden + hidden * D)
    bias_bytes = 4 * (3 * D + D + hidden + D)
    act_bytes = 4 * (bt * T) * (8 * D + 2 * hidden) + 4 * bt * (6 * D + 2 * T * T)
    vmem_limit = int(min(128 * 1024 * 1024,
                         max(32 * 1024 * 1024,
                             2 * (weight_bytes + bias_bytes) + 4 * act_bytes)))

    kernel = functools.partial(ncst_block_kernel, dim=D, n_heads=n_heads,
                               bt=bt, seq=T)

    return pl.pallas_call(
        kernel,
        out_shape=jax.ShapeDtypeStruct((B, T, D), x.dtype),
        grid=grid,
        in_specs=[
            pl.BlockSpec((bt, T, D), lambda b: (b, 0, 0)),         # x block
            pl.BlockSpec((bt, 6, 1, D), lambda b: (b, 0, 0, 0)),   # adaLN modulation
            vmem_full,   # W_qkv  (D, 3D)  bf16
            vmem_full,   # b_qkv  (1, 3D)  f32
            vmem_full,   # W_proj (D, D)   bf16
            vmem_full,   # b_proj (1, D)   f32
            vmem_full,   # W_mlp1 (D, 4D)  bf16
            vmem_full,   # b_mlp1 (1, 4D)  f32
            vmem_full,   # W_mlp2 (4D, D)  bf16
            vmem_full,   # b_mlp2 (1, D)   f32
        ],
        out_specs=pl.BlockSpec((bt, T, D), lambda b: (b, 0, 0)),
        compiler_params=pltpu.CompilerParams(
            dimension_semantics=("parallel",),
            vmem_limit_bytes=vmem_limit),
    )(x, mod, as_bf16("wqkv"), params["bqkv"], as_bf16("wproj"), params["bproj"],
      as_bf16("w1"), params["b1"], as_bf16("w2"), params["b2"])


def ref_forward(x, noise_level, params, n_heads):
    """Pure-JAX (f32, exact-GELU) reference matching PyTorch NCSTBlock.forward."""
    B, T, D = x.shape
    mod = params["emb"][noise_level][:, None, :]
    sa, sha, ga, sm, shm, gm = jnp.split(mod, 6, axis=-1)

    def ln(h):
        mu = h.mean(-1, keepdims=True)
        var = ((h - mu) ** 2).mean(-1, keepdims=True)
        return (h - mu) / jnp.sqrt(var + 1e-6)

    h = sa * ln(x) + sha
    qkv = h @ params["wqkv"] + params["bqkv"]
    q, k, v = jnp.split(qkv, 3, axis=-1)
    hd = D // n_heads
    q = q.reshape(B, T, n_heads, hd).transpose(0, 2, 1, 3)
    k = k.reshape(B, T, n_heads, hd).transpose(0, 2, 1, 3)
    v = v.reshape(B, T, n_heads, hd).transpose(0, 2, 1, 3)
    s = (q @ jnp.swapaxes(k, -1, -2)) / math.sqrt(hd)
    p = jax.nn.softmax(s, axis=-1)
    a = (p @ v).transpose(0, 2, 1, 3).reshape(B, T, D)
    a = a @ params["wproj"] + params["bproj"]
    x1 = x + ga * a

    h2 = sm * ln(x1) + shm
    mid = h2 @ params["w1"] + params["b1"]
    mid = 0.5 * mid * (1.0 + jax.lax.erf(mid / math.sqrt(2.0)))  # exact GELU
    return x1 + gm * (mid @ params["w2"] + params["b2"])


if __name__ == "__main__":
    B, T, D, n_heads = 2, 8, 32, 4
    total_steps = 10
    hidden = int(4.0 * D)

    key = jax.random.PRNGKey(0)
    ks = jax.random.split(key, 11)
    init = lambda k, shape, scale=0.05: (scale * jax.random.normal(k, shape)).astype(jnp.float32)

    params = {
        "emb":   init(ks[0], (total_steps, 6 * D), 0.5),   # nn.Embedding(total_steps, 6*dim)
        "wqkv":  init(ks[1], (D, 3 * D)),                  # attn.attn   (Linear dim -> 3*dim)
        "bqkv":  init(ks[2], (1, 3 * D)),
        "wproj": init(ks[3], (D, D)),                      # attn.attn_proj
        "bproj": init(ks[4], (1, D)),
        "w1":    init(ks[5], (D, hidden)),                 # mlp.layers[0]
        "b1":    init(ks[6], (1, hidden)),
        "w2":    init(ks[7], (hidden, D)),                 # mlp.layers[2]
        "b2":    init(ks[8], (1, D)),
    }
    x = jax.random.normal(ks[9], (B, T, D), dtype=jnp.float32)
    noise_level = jnp.array([3, 7], dtype=jnp.int32)

    out = jax.block_until_ready(ncst_block(x, noise_level, params, n_heads=n_heads))
    ref = ref_forward(x, noise_level, params, n_heads)

    assert out.shape == (B, T, D)
    # bf16 matmul inputs + tanh-GELU + approx reciprocal vs. the exact f32
    # reference: errors are a few 1e-3 at these magnitudes.
    err = float(jnp.max(jnp.abs(out - ref)))
    assert err < 3e-2, f"max abs error vs reference: {err}"
    print("KERNEL_OK")
</pallas_src>

<mosaic_0001>
module attributes {stable_mosaic.version = 11 : i64} {
  func.func @ncst_block_kernel(%arg0: i32, %arg1: memref<2x8x32xf32, #tpu.memory_space<vmem>>, %arg2: memref<2x6x1x32xf32, #tpu.memory_space<vmem>>, %arg3: memref<32x96xbf16, #tpu.memory_space<vmem>>, %arg4: memref<1x96xf32, #tpu.memory_space<vmem>>, %arg5: memref<32x32xbf16, #tpu.memory_space<vmem>>, %arg6: memref<1x32xf32, #tpu.memory_space<vmem>>, %arg7: memref<32x128xbf16, #tpu.memory_space<vmem>>, %arg8: memref<1x128xf32, #tpu.memory_space<vmem>>, %arg9: memref<128x32xbf16, #tpu.memory_space<vmem>>, %arg10: memref<1x32xf32, #tpu.memory_space<vmem>>, %arg11: memref<2x8x32xf32, #tpu.memory_space<vmem>>) attributes {dimension_semantics = [#tpu.dimension_semantics<parallel>], iteration_bounds = array<i64: 1>, scalar_prefetch = 0 : i64, scratch_operands = 0 : i64, tpu.core_type = #tpu.core_type<tc>, window_params = [{transform_indices = @transform_0, window_bounds = array<i64: 2, 8, 32>}, {transform_indices = @transform_1, window_bounds = array<i64: 2, 6, 1, 32>}, {pipeline_mode = #tpu.pipeline_mode<synchronous>, transform_indices = @transform_2, window_bounds = array<i64: 32, 96>}, {pipeline_mode = #tpu.pipeline_mode<synchronous>, transform_indices = @transform_3, window_bounds = array<i64: 1, 96>}, {pipeline_mode = #tpu.pipeline_mode<synchronous>, transform_indices = @transform_4, window_bounds = array<i64: 32, 32>}, {pipeline_mode = #tpu.pipeline_mode<synchronous>, transform_indices = @transform_5, window_bounds = array<i64: 1, 32>}, {pipeline_mode = #tpu.pipeline_mode<synchronous>, transform_indices = @transform_6, window_bounds = array<i64: 32, 128>}, {pipeline_mode = #tpu.pipeline_mode<synchronous>, transform_indices = @transform_7, window_bounds = array<i64: 1, 128>}, {pipeline_mode = #tpu.pipeline_mode<synchronous>, transform_indices = @transform_8, window_bounds = array<i64: 128, 32>}, {pipeline_mode = #tpu.pipeline_mode<synchronous>, transform_indices = @transform_9, window_bounds = array<i64: 1, 32>}, {transform_indices = @transform_10, window_bounds = array<i64: 2, 8, 32>}]} {
    %c0 = arith.constant 0 : index
    %c0_0 = arith.constant 0 : index
    %c0_1 = arith.constant 0 : index
    %0 = vector.load %arg1[%c0, %c0_0, %c0_1] : memref<2x8x32xf32, #tpu.memory_space<vmem>>, vector<2x8x32xf32>
    %c0_2 = arith.constant 0 : index
    %c0_3 = arith.constant 0 : index
    %c0_4 = arith.constant 0 : index
    %c0_5 = arith.constant 0 : index
    %1 = vector.load %arg2[%c0_2, %c0_3, %c0_4, %c0_5] : memref<2x6x1x32xf32, #tpu.memory_space<vmem>>, vector<2x6x1x32xf32>
    %2 = vector.extract_strided_slice %1 {offsets = [0, 0, 0, 0], sizes = [2, 1, 1, 32], strides = [1, 1, 1, 1]} : vector<2x6x1x32xf32> to vector<2x1x1x32xf32>
    %3 = vector.shape_cast %2 : vector<2x1x1x32xf32> to vector<2x1x32xf32>
    %4 = vector.extract_strided_slice %1 {offsets = [0, 1, 0, 0], sizes = [2, 1, 1, 32], strides = [1, 1, 1, 1]} : vector<2x6x1x32xf32> to vector<2x1x1x32xf32>
    %5 = vector.shape_cast %4 : vector<2x1x1x32xf32> to vector<2x1x32xf32>
    %6 = vector.extract_strided_slice %1 {offsets = [0, 2, 0, 0], sizes = [2, 1, 1, 32], strides = [1, 1, 1, 1]} : vector<2x6x1x32xf32> to vector<2x1x1x32xf32>
    %7 = vector.shape_cast %6 : vector<2x1x1x32xf32> to vector<2x1x32xf32>
    %8 = vector.extract_strided_slice %1 {offsets = [0, 3, 0, 0], sizes = [2, 1, 1, 32], strides = [1, 1, 1, 1]} : vector<2x6x1x32xf32> to vector<2x1x1x32xf32>
    %9 = vector.shape_cast %8 : vector<2x1x1x32xf32> to vector<2x1x32xf32>
    %10 = vector.extract_strided_slice %1 {offsets = [0, 4, 0, 0], sizes = [2, 1, 1, 32], strides = [1, 1, 1, 1]} : vector<2x6x1x32xf32> to vector<2x1x1x32xf32>
    %11 = vector.shape_cast %10 : vector<2x1x1x32xf32> to vector<2x1x32xf32>
    %12 = vector.extract_strided_slice %1 {offsets = [0, 5, 0, 0], sizes = [2, 1, 1, 32], strides = [1, 1, 1, 1]} : vector<2x6x1x32xf32> to vector<2x1x1x32xf32>
    %13 = vector.shape_cast %12 : vector<2x1x1x32xf32> to vector<2x1x32xf32>
    %cst = arith.constant dense<0.000000e+00> : vector<2x8xf32>
    %14 = vector.multi_reduction <add>, %0, %cst [2] : vector<2x8x32xf32> to vector<2x8xf32>
    %15 = vector.shape_cast %14 : vector<2x8xf32> to vector<2x8x1xf32>
    %cst_6 = arith.constant 3.200000e+01 : f32
    %16 = vector.broadcast %cst_6 : f32 to vector<2x8x1xf32>
    %17 = arith.divf %15, %16 : vector<2x8x1xf32>
    %18 = vector.broadcast %17 : vector<2x8x1xf32> to vector<2x8x32xf32>
    %19 = arith.subf %0, %18 : vector<2x8x32xf32>
    %20 = arith.mulf %19, %19 : vector<2x8x32xf32>
    %cst_7 = arith.constant dense<0.000000e+00> : vector<2x8xf32>
    %21 = vector.multi_reduction <add>, %20, %cst_7 [2] : vector<2x8x32xf32> to vector<2x8xf32>
    %22 = vector.shape_cast %21 : vector<2x8xf32> to vector<2x8x1xf32>
    %cst_8 = arith.constant 3.200000e+01 : f32
    %23 = vector.broadcast %cst_8 : f32 to vector<2x8x1xf32>
    %24 = arith.divf %22, %23 : vector<2x8x1xf32>
    %25 = vector.broadcast %17 : vector<2x8x1xf32> to vector<2x8x32xf32>
    %26 = arith.subf %0, %25 : vector<2x8x32xf32>
    %cst_9 = arith.constant 9.99999997E-7 : f32
    %27 = vector.broadcast %cst_9 : f32 to vector<2x8x1xf32>
    %28 = arith.addf %24, %27 : vector<2x8x1xf32>
    %29 = math.rsqrt %28 : vector<2x8x1xf32>
    %30 = vector.broadcast %29 : vector<2x8x1xf32> to vector<2x8x32xf32>
    %31 = arith.mulf %26, %30 : vector<2x8x32xf32>
    %32 = vector.broadcast %3 : vector<2x1x32xf32> to vector<2x8x32xf32>
    %33 = arith.mulf %32, %31 : vector<2x8x32xf32>
    %34 = vector.broadcast %5 : vector<2x1x32xf32> to vector<2x8x32xf32>
    %35 = arith.addf %33, %34 : vector<2x8x32xf32>
    %36 = vector.shape_cast %35 : vector<2x8x32xf32> to vector<16x32xf32>
    %37 = arith.truncf %36 : vector<16x32xf32> to vector<16x32xbf16>
    %c0_10 = arith.constant 0 : index
    %c0_11 = arith.constant 0 : index
    %38 = vector.load %arg3[%c0_10, %c0_11] : memref<32x96xbf16, #tpu.memory_space<vmem>>, vector<32x96xbf16>
    %cst_12 = arith.constant dense<0.000000e+00> : vector<16x96xf32>
    %39 = tpu.matmul %37, %38, %cst_12 {dimension_numbers = #tpu.dot_dimension_numbers<[1], [0], [0], [1], [0, 0, 1, 1], [], []>} : vector<16x32xbf16>, vector<32x96xbf16>, vector<16x96xf32> -> vector<16x96xf32>
    %c0_13 = arith.constant 0 : index
    %c0_14 = arith.constant 0 : index
    %40 = vector.load %arg4[%c0_13, %c0_14] : memref<1x96xf32, #tpu.memory_space<vmem>>, vector<1x96xf32>
    %41 = vector.broadcast %40 : vector<1x96xf32> to vector<16x96xf32>
    %42 = arith.addf %39, %41 : vector<16x96xf32>
    %43 = vector.shape_cast %42 : vector<16x96xf32> to vector<2x8x96xf32>
    %44 = vector.extract_strided_slice %43 {offsets = [0, 0, 0], sizes = [2, 8, 32], strides = [1, 1, 1]} : vector<2x8x96xf32> to vector<2x8x32xf32>
    %45 = arith.truncf %44 : vector<2x8x32xf32> to vector<2x8x32xbf16>
    %46 = vector.extract_strided_slice %43 {offsets = [0, 0, 32], sizes = [2, 8, 32], strides = [1, 1, 1]} : vector<2x8x96xf32> to vector<2x8x32xf32>
    %47 = arith.truncf %46 : vector<2x8x32xf32> to vector<2x8x32xbf16>
    %48 = vector.extract_strided_slice %43 {offsets = [0, 0, 64], sizes = [2, 8, 32], strides = [1, 1, 1]} : vector<2x8x96xf32> to vector<2x8x32xf32>
    %49 = arith.truncf %48 : vector<2x8x32xf32> to vector<2x8x32xbf16>
    %cst_15 = arith.constant 0.000000e+00 : f32
    %50 = vector.broadcast %cst_15 : f32 to vector<16x32xf32>
    %51 = vector.extract_strided_slice %45 {offsets = [0, 0, 0], sizes = [2, 8, 8], strides = [1, 1, 1]} : vector<2x8x32xbf16> to vector<2x8x8xbf16>
    %52 = vector.extract_strided_slice %47 {offsets = [0, 0, 0], sizes = [2, 8, 8], strides = [1, 1, 1]} : vector<2x8x32xbf16> to vector<2x8x8xbf16>
    %53 = vector.extract_strided_slice %49 {offsets = [0, 0, 0], sizes = [2, 8, 8], strides = [1, 1, 1]} : vector<2x8x32xbf16> to vector<2x8x8xbf16>
    "tpu.trace_start"() <{level = 10 : i32, message = "bqd,bkd->bqk"}> : () -> ()
    %cst_16 = arith.constant dense<0.000000e+00> : vector<2x8x8xf32>
    %54 = tpu.matmul %51, %52, %cst_16 {dimension_numbers = #tpu.dot_dimension_numbers<[2], [2], [1], [1], [0, 0, 0, 1, 1, 1], [0], [0]>} : vector<2x8x8xbf16>, vector<2x8x8xbf16>, vector<2x8x8xf32> -> vector<2x8x8xf32>
    "tpu.trace_stop"() : () -> ()
    %cst_17 = arith.constant 0.353553385 : f32
    %55 = vector.broadcast %cst_17 : f32 to vector<2x8x8xf32>
    %56 = arith.mulf %54, %55 : vector<2x8x8xf32>
    %cst_18 = arith.constant dense<0xFF800000> : vector<2x8xf32>
    %57 = vector.multi_reduction <maximumf>, %56, %cst_18 [2] : vector<2x8x8xf32> to vector<2x8xf32>
    %58 = vector.shape_cast %57 : vector<2x8xf32> to vector<2x8x1xf32>
    %59 = vector.broadcast %58 : vector<2x8x1xf32> to vector<2x8x8xf32>
    %60 = arith.subf %56, %59 : vector<2x8x8xf32>
    %61 = math.exp %60 : vector<2x8x8xf32>
    %cst_19 = arith.constant dense<0.000000e+00> : vector<2x8xf32>
    %62 = vector.multi_reduction <add>, %61, %cst_19 [2] : vector<2x8x8xf32> to vector<2x8xf32>
    %63 = vector.shape_cast %62 : vector<2x8xf32> to vector<2x8x1xf32>
    %64 = tpu.reciprocal %63 {approx = true} : vector<2x8x1xf32> -> vector<2x8x1xf32>
    %65 = vector.broadcast %64 : vector<2x8x1xf32> to vector<2x8x8xf32>
    %66 = arith.mulf %61, %65 : vector<2x8x8xf32>
    %67 = arith.truncf %66 : vector<2x8x8xf32> to vector<2x8x8xbf16>
    "tpu.trace_start"() <{level = 10 : i32, message = "bqk,bkd->bqd"}> : () -> ()
    %cst_20 = arith.constant dense<0.000000e+00> : vector<2x8x8xf32>
    %68 = tpu.matmul %67, %53, %cst_20 {dimension_numbers = #tpu.dot_dimension_numbers<[2], [1], [1], [2], [0, 0, 0, 1, 1, 2], [0], [0]>} : vector<2x8x8xbf16>, vector<2x8x8xbf16>, vector<2x8x8xf32> -> vector<2x8x8xf32>
    "tpu.trace_stop"() : () -> ()
    %69 = vector.shape_cast %68 : vector<2x8x8xf32> to vector<16x8xf32>
    %70 = arith.truncf %69 : vector<16x8xf32> to vector<16x8xbf16>
    %c0_21 = arith.constant 0 : index
    %c0_22 = arith.constant 0 : index
    %71 = vector.load %arg5[%c0_21, %c0_22] : memref<32x32xbf16, #tpu.memory_space<vmem>>, vector<8x32xbf16>
    %cst_23 = arith.constant dense<0.000000e+00> : vector<16x32xf32>
    %72 = tpu.matmul %70, %71, %cst_23 {dimension_numbers = #tpu.dot_dimension_numbers<[1], [0], [0], [1], [0, 0, 1, 1], [], []>} : vector<16x8xbf16>, vector<8x32xbf16>, vector<16x32xf32> -> vector<16x32xf32>
    %73 = arith.addf %50, %72 : vector<16x32xf32>
    %74 = vector.extract_strided_slice %45 {offsets = [0, 0, 8], sizes = [2, 8, 8], strides = [1, 1, 1]} : vector<2x8x32xbf16> to vector<2x8x8xbf16>
    %75 = vector.extract_strided_slice %47 {offsets = [0, 0, 8], sizes = [2, 8, 8], strides = [1, 1, 1]} : vector<2x8x32xbf16> to vector<2x8x8xbf16>
    %76 = vector.extract_strided_slice %49 {offsets = [0, 0, 8], sizes = [2, 8, 8], strides = [1, 1, 1]} : vector<2x8x32xbf16> to vector<2x8x8xbf16>
    "tpu.trace_start"() <{level = 10 : i32, message = "bqd,bkd->bqk"}> : () -> ()
    %cst_24 = arith.constant dense<0.000000e+00> : vector<2x8x8xf32>
    %77 = tpu.matmul %74, %75, %cst_24 {dimension_numbers = #tpu.dot_dimension_numbers<[2], [2], [1], [1], [0, 0, 0, 1, 1, 1], [0], [0]>} : vector<2x8x8xbf16>, vector<2x8x8xbf16>, vector<2x8x8xf32> -> vector<2x8x8xf32>
    "tpu.trace_stop"() : () -> ()
    %cst_25 = arith.constant 0.353553385 : f32
    %78 = vector.broadcast %cst_25 : f32 to vector<2x8x8xf32>
    %79 = arith.mulf %77, %78 : vector<2x8x8xf32>
    %cst_26 = arith.constant dense<0xFF800000> : vector<2x8xf32>
    %80 = vector.multi_reduction <maximumf>, %79, %cst_26 [2] : vector<2x8x8xf32> to vector<2x8xf32>
    %81 = vector.shape_cast %80 : vector<2x8xf32> to vector<2x8x1xf32>
    %82 = vector.broadcast %81 : vector<2x8x1xf32> to vector<2x8x8xf32>
    %83 = arith.subf %79, %82 : vector<2x8x8xf32>
    %84 = math.exp %83 : vector<2x8x8xf32>
    %cst_27 = arith.constant dense<0.000000e+00> : vector<2x8xf32>
    %85 = vector.multi_reduction <add>, %84, %cst_27 [2] : vector<2x8x8xf32> to vector<2x8xf32>
    %86 = vector.shape_cast %85 : vector<2x8xf32> to vector<2x8x1xf32>
    %87 = tpu.reciprocal %86 {approx = true} : vector<2x8x1xf32> -> vector<2x8x1xf32>
    %88 = vector.broadcast %87 : vector<2x8x1xf32> to vector<2x8x8xf32>
    %89 = arith.mulf %84, %88 : vector<2x8x8xf32>
    %90 = arith.truncf %89 : vector<2x8x8xf32> to vector<2x8x8xbf16>
    "tpu.trace_start"() <{level = 10 : i32, message = "bqk,bkd->bqd"}> : () -> ()
    %cst_28 = arith.constant dense<0.000000e+00> : vector<2x8x8xf32>
    %91 = tpu.matmul %90, %76, %cst_28 {dimension_numbers = #tpu.dot_dimension_numbers<[2], [1], [1], [2], [0, 0, 0, 1, 1, 2], [0], [0]>} : vector<2x8x8xbf16>, vector<2x8x8xbf16>, vector<2x8x8xf32> -> vector<2x8x8xf32>
    "tpu.trace_stop"() : () -> ()
    %92 = vector.shape_cast %91 : vector<2x8x8xf32> to vector<16x8xf32>
    %93 = arith.truncf %92 : vector<16x8xf32> to vector<16x8xbf16>
    %c8 = arith.constant 8 : index
    %c0_29 = arith.constant 0 : index
    %94 = vector.load %arg5[%c8, %c0_29] : memref<32x32xbf16, #tpu.memory_space<vmem>>, vector<8x32xbf16>
    %cst_30 = arith.constant dense<0.000000e+00> : vector<16x32xf32>
    %95 = tpu.matmul %93, %94, %cst_30 {dimension_numbers = #tpu.dot_dimension_numbers<[1], [0], [0], [1], [0, 0, 1, 1], [], []>} : vector<16x8xbf16>, vector<8x32xbf16>, vector<16x32xf32> -> vector<16x32xf32>
    %96 = arith.addf %73, %95 : vector<16x32xf32>
    %97 = vector.extract_strided_slice %45 {offsets = [0, 0, 16], sizes = [2, 8, 8], strides = [1, 1, 1]} : vector<2x8x32xbf16> to vector<2x8x8xbf16>
    %98 = vector.extract_strided_slice %47 {offsets = [0, 0, 16], sizes = [2, 8, 8], strides = [1, 1, 1]} : vector<2x8x32xbf16> to vector<2x8x8xbf16>
    %99 = vector.extract_strided_slice %49 {offsets = [0, 0, 16], sizes = [2, 8, 8], strides = [1, 1, 1]} : vector<2x8x32xbf16> to vector<2x8x8xbf16>
    "tpu.trace_start"() <{level = 10 : i32, message = "bqd,bkd->bqk"}> : () -> ()
    %cst_31 = arith.constant dense<0.000000e+00> : vector<2x8x8xf32>
    %100 = tpu.matmul %97, %98, %cst_31 {dimension_numbers = #tpu.dot_dimension_numbers<[2], [2], [1], [1], [0, 0, 0, 1, 1, 1], [0], [0]>} : vector<2x8x8xbf16>, vector<2x8x8xbf16>, vector<2x8x8xf32> -> vector<2x8x8xf32>
    "tpu.trace_stop"() : () -> ()
    %cst_32 = arith.constant 0.353553385 : f32
    %101 = vector.broadcast %cst_32 : f32 to vector<2x8x8xf32>
    %102 = arith.mulf %100, %101 : vector<2x8x8xf32>
    %cst_33 = arith.constant dense<0xFF800000> : vector<2x8xf32>
    %103 = vector.multi_reduction <maximumf>, %102, %cst_33 [2] : vector<2x8x8xf32> to vector<2x8xf32>
    %104 = vector.shape_cast %103 : vector<2x8xf32> to vector<2x8x1xf32>
    %105 = vector.broadcast %104 : vector<2x8x1xf32> to vector<2x8x8xf32>
    %106 = arith.subf %102, %105 : vector<2x8x8xf32>
    %107 = math.exp %106 : vector<2x8x8xf32>
    %cst_34 = arith.constant dense<0.000000e+00> : vector<2x8xf32>
    %108 = vector.multi_reduction <add>, %107, %cst_34 [2] : vector<2x8x8xf32> to vector<2x8xf32>
    %109 = vector.shape_cast %108 : vector<2x8xf32> to vector<2x8x1xf32>
    %110 = tpu.reciprocal %109 {approx = true} : vector<2x8x1xf32> -> vector<2x8x1xf32>
    %111 = vector.broadcast %110 : vector<2x8x1xf32> to vector<2x8x8xf32>
    %112 = arith.mulf %107, %111 : vector<2x8x8xf32>
    %113 = arith.truncf %112 : vector<2x8x8xf32> to vector<2x8x8xbf16>
    "tpu.trace_start"() <{level = 10 : i32, message = "bqk,bkd->bqd"}> : () -> ()
    %cst_35 = arith.constant dense<0.000000e+00> : vector<2x8x8xf32>
    %114 = tpu.matmul %113, %99, %cst_35 {dimension_numbers = #tpu.dot_dimension_numbers<[2], [1], [1], [2], [0, 0, 0, 1, 1, 2], [0], [0]>} : vector<2x8x8xbf16>, vector<2x8x8xbf16>, vector<2x8x8xf32> -> vector<2x8x8xf32>
    "tpu.trace_stop"() : () -> ()
    %115 = vector.shape_cast %114 : vector<2x8x8xf32> to vector<16x8xf32>
    %116 = arith.truncf %115 : vector<16x8xf32> to vector<16x8xbf16>
    %c16 = arith.constant 16 : index
    %c0_36 = arith.constant 0 : index
    %117 = vector.load %arg5[%c16, %c0_36] : memref<32x32xbf16, #tpu.memory_space<vmem>>, vector<8x32xbf16>
    %cst_37 = arith.constant dense<0.000000e+00> : vector<16x32xf32>
    %118 = tpu.matmul %116, %117, %cst_37 {dimension_numbers = #tpu.dot_dimension_numbers<[1], [0], [0], [1], [0, 0, 1, 1], [], []>} : vector<16x8xbf16>, vector<8x32xbf16>, vector<16x32xf32> -> vector<16x32xf32>
    %119 = arith.addf %96, %118 : vector<16x32xf32>
    %120 = vector.extract_strided_slice %45 {offsets = [0, 0, 24], sizes = [2, 8, 8], strides = [1, 1, 1]} : vector<2x8x32xbf16> to vector<2x8x8xbf16>
    %121 = vector.extract_strided_slice %47 {offsets = [0, 0, 24], sizes = [2, 8, 8], strides = [1, 1, 1]} : vector<2x8x32xbf16> to vector<2x8x8xbf16>
    %122 = vector.extract_strided_slice %49 {offsets = [0, 0, 24], sizes = [2, 8, 8], strides = [1, 1, 1]} : vector<2x8x32xbf16> to vector<2x8x8xbf16>
    "tpu.trace_start"() <{level = 10 : i32, message = "bqd,bkd->bqk"}> : () -> ()
    %cst_38 = arith.constant dense<0.000000e+00> : vector<2x8x8xf32>
    %123 = tpu.matmul %120, %121, %cst_38 {dimension_numbers = #tpu.dot_dimension_numbers<[2], [2], [1], [1], [0, 0, 0, 1, 1, 1], [0], [0]>} : vector<2x8x8xbf16>, vector<2x8x8xbf16>, vector<2x8x8xf32> -> vector<2x8x8xf32>
    "tpu.trace_stop"() : () -> ()
    %cst_39 = arith.constant 0.353553385 : f32
    %124 = vector.broadcast %cst_39 : f32 to vector<2x8x8xf32>
    %125 = arith.mulf %123, %124 : vector<2x8x8xf32>
    %cst_40 = arith.constant dense<0xFF800000> : vector<2x8xf32>
    %126 = vector.multi_reduction <maximumf>, %125, %cst_40 [2] : vector<2x8x8xf32> to vector<2x8xf32>
    %127 = vector.shape_cast %126 : vector<2x8xf32> to vector<2x8x1xf32>
    %128 = vector.broadcast %127 : vector<2x8x1xf32> to vector<2x8x8xf32>
    %129 = arith.subf %125, %128 : vector<2x8x8xf32>
    %130 = math.exp %129 : vector<2x8x8xf32>
    %cst_41 = arith.constant dense<0.000000e+00> : vector<2x8xf32>
    %131 = vector.multi_reduction <add>, %130, %cst_41 [2] : vector<2x8x8xf32> to vector<2x8xf32>
    %132 = vector.shape_cast %131 : vector<2x8xf32> to vector<2x8x1xf32>
    %133 = tpu.reciprocal %132 {approx = true} : vector<2x8x1xf32> -> vector<2x8x1xf32>
    %134 = vector.broadcast %133 : vector<2x8x1xf32> to vector<2x8x8xf32>
    %135 = arith.mulf %130, %134 : vector<2x8x8xf32>
    %136 = arith.truncf %135 : vector<2x8x8xf32> to vector<2x8x8xbf16>
    "tpu.trace_start"() <{level = 10 : i32, message = "bqk,bkd->bqd"}> : () -> ()
    %cst_42 = arith.constant dense<0.000000e+00> : vector<2x8x8xf32>
    %137 = tpu.matmul %136, %122, %cst_42 {dimension_numbers = #tpu.dot_dimension_numbers<[2], [1], [1], [2], [0, 0, 0, 1, 1, 2], [0], [0]>} : vector<2x8x8xbf16>, vector<2x8x8xbf16>, vector<2x8x8xf32> -> vector<2x8x8xf32>
    "tpu.trace_stop"() : () -> ()
    %138 = vector.shape_cast %137 : vector<2x8x8xf32> to vector<16x8xf32>
    %139 = arith.truncf %138 : vector<16x8xf32> to vector<16x8xbf16>
    %c24 = arith.constant 24 : index
    %c0_43 = arith.constant 0 : index
    %140 = vector.load %arg5[%c24, %c0_43] : memref<32x32xbf16, #tpu.memory_space<vmem>>, vector<8x32xbf16>
    %cst_44 = arith.constant dense<0.000000e+00> : vector<16x32xf32>
    %141 = tpu.matmul %139, %140, %cst_44 {dimension_numbers = #tpu.dot_dimension_numbers<[1], [0], [0], [1], [0, 0, 1, 1], [], []>} : vector<16x8xbf16>, vector<8x32xbf16>, vector<16x32xf32> -> vector<16x32xf32>
    %142 = arith.addf %119, %141 : vector<16x32xf32>
    %c0_45 = arith.constant 0 : index
    %c0_46 = arith.constant 0 : index
    %143 = vector.load %arg6[%c0_45, %c0_46] : memref<1x32xf32, #tpu.memory_space<vmem>>, vector<1x32xf32>
    %144 = vector.broadcast %143 : vector<1x32xf32> to vector<16x32xf32>
    %145 = arith.addf %142, %144 : vector<16x32xf32>
    %146 = vector.shape_cast %145 : vector<16x32xf32> to vector<2x8x32xf32>
    %147 = vector.broadcast %7 : vector<2x1x32xf32> to vector<2x8x32xf32>
    %148 = arith.mulf %147, %146 : vector<2x8x32xf32>
    %149 = arith.addf %0, %148 : vector<2x8x32xf32>
    %cst_47 = arith.constant dense<0.000000e+00> : vector<2x8xf32>
    %150 = vector.multi_reduction <add>, %149, %cst_47 [2] : vector<2x8x32xf32> to vector<2x8xf32>
    %151 = vector.shape_cast %150 : vector<2x8xf32> to vector<2x8x1xf32>
    %cst_48 = arith.constant 3.200000e+01 : f32
    %152 = vector.broadcast %cst_48 : f32 to vector<2x8x1xf32>
    %153 = arith.divf %151, %152 : vector<2x8x1xf32>
    %154 = vector.broadcast %153 : vector<2x8x1xf32> to vector<2x8x32xf32>
    %155 = arith.subf %149, %154 : vector<2x8x32xf32>
    %156 = arith.mulf %155, %155 : vector<2x8x32xf32>
    %cst_49 = arith.constant dense<0.000000e+00> : vector<2x8xf32>
    %157 = vector.multi_reduction <add>, %156, %cst_49 [2] : vector<2x8x32xf32> to vector<2x8xf32>
    %158 = vector.shape_cast %157 : vector<2x8xf32> to vector<2x8x1xf32>
    %cst_50 = arith.constant 3.200000e+01 : f32
    %159 = vector.broadcast %cst_50 : f32 to vector<2x8x1xf32>
    %160 = arith.divf %158, %159 : vector<2x8x1xf32>
    %161 = vector.broadcast %153 : vector<2x8x1xf32> to vector<2x8x32xf32>
    %162 = arith.subf %149, %161 : vector<2x8x32xf32>
    %cst_51 = arith.constant 9.99999997E-7 : f32
    %163 = vector.broadcast %cst_51 : f32 to vector<2x8x1xf32>
    %164 = arith.addf %160, %163 : vector<2x8x1xf32>
    %165 = math.rsqrt %164 : vector<2x8x1xf32>
    %166 = vector.broadcast %165 : vector<2x8x1xf32> to vector<2x8x32xf32>
    %167 = arith.mulf %162, %166 : vector<2x8x32xf32>
    %168 = vector.broadcast %9 : vector<2x1x32xf32> to vector<2x8x32xf32>
    %169 = arith.mulf %168, %167 : vector<2x8x32xf32>
    %170 = vector.broadcast %11 : vector<2x1x32xf32> to vector<2x8x32xf32>
    %171 = arith.addf %169, %170 : vector<2x8x32xf32>
    %172 = vector.shape_cast %171 : vector<2x8x32xf32> to vector<16x32xf32>
    %173 = arith.truncf %172 : vector<16x32xf32> to vector<16x32xbf16>
    %c0_52 = arith.constant 0 : index
    %c0_53 = arith.constant 0 : index
    %174 = vector.load %arg7[%c0_52, %c0_53] : memref<32x128xbf16, #tpu.memory_space<vmem>>, vector<32x128xbf16>
    %cst_54 = arith.constant dense<0.000000e+00> : vector<16x128xf32>
    %175 = tpu.matmul %173, %174, %cst_54 {dimension_numbers = #tpu.dot_dimension_numbers<[1], [0], [0], [1], [0, 0, 1, 1], [], []>} : vector<16x32xbf16>, vector<32x128xbf16>, vector<16x128xf32> -> vector<16x128xf32>
    %c0_55 = arith.constant 0 : index
    %c0_56 = arith.constant 0 : index
    %176 = vector.load %arg8[%c0_55, %c0_56] : memref<1x128xf32, #tpu.memory_space<vmem>>, vector<1x128xf32>
    %177 = vector.broadcast %176 : vector<1x128xf32> to vector<16x128xf32>
    %178 = arith.addf %175, %177 : vector<16x128xf32>
    %cst_57 = arith.constant 5.000000e-01 : f32
    %179 = vector.broadcast %cst_57 : f32 to vector<16x128xf32>
    %180 = arith.mulf %179, %178 : vector<16x128xf32>
    %cst_58 = arith.constant 4.471500e-02 : f32
    %181 = vector.broadcast %cst_58 : f32 to vector<16x128xf32>
    %182 = arith.mulf %181, %178 : vector<16x128xf32>
    %183 = arith.mulf %182, %178 : vector<16x128xf32>
    %184 = arith.mulf %183, %178 : vector<16x128xf32>
    %185 = arith.addf %178, %184 : vector<16x128xf32>
    %cst_59 = arith.constant 0.797884583 : f32
    %186 = vector.broadcast %cst_59 : f32 to vector<16x128xf32>
    %187 = arith.mulf %186, %185 : vector<16x128xf32>
    %188 = math.tanh %187 : vector<16x128xf32>
    %cst_60 = arith.constant 1.000000e+00 : f32
    %189 = vector.broadcast %cst_60 : f32 to vector<16x128xf32>
    %190 = arith.addf %189, %188 : vector<16x128xf32>
    %191 = arith.mulf %180, %190 : vector<16x128xf32>
    %192 = arith.truncf %191 : vector<16x128xf32> to vector<16x128xbf16>
    %c0_61 = arith.constant 0 : index
    %c0_62 = arith.constant 0 : index
    %193 = vector.load %arg9[%c0_61, %c0_62] : memref<128x32xbf16, #tpu.memory_space<vmem>>, vector<128x32xbf16>
    %cst_63 = arith.constant dense<0.000000e+00> : vector<16x32xf32>
    %194 = tpu.matmul %192, %193, %cst_63 {dimension_numbers = #tpu.dot_dimension_numbers<[1], [0], [0], [1], [0, 0, 1, 1], [], []>} : vector<16x128xbf16>, vector<128x32xbf16>, vector<16x32xf32> -> vector<16x32xf32>
    %c0_64 = arith.constant 0 : index
    %c0_65 = arith.constant 0 : index
    %195 = vector.load %arg10[%c0_64, %c0_65] : memref<1x32xf32, #tpu.memory_space<vmem>>, vector<1x32xf32>
    %196 = vector.broadcast %195 : vector<1x32xf32> to vector<16x32xf32>
    %197 = arith.addf %194, %196 : vector<16x32xf32>
    %198 = vector.shape_cast %197 : vector<16x32xf32> to vector<2x8x32xf32>
    %199 = vector.broadcast %13 : vector<2x1x32xf32> to vector<2x8x32xf32>
    %200 = arith.mulf %199, %198 : vector<2x8x32xf32>
    %201 = arith.addf %149, %200 : vector<2x8x32xf32>
    %c0_66 = arith.constant 0 : index
    %c0_67 = arith.constant 0 : index
    %c0_68 = arith.constant 0 : index
    %202 = vector.load %arg11[%c0_66, %c0_67, %c0_68] : memref<2x8x32xf32, #tpu.memory_space<vmem>>, vector<2x8x32xf32>
    tpu.vector_store %arg11[%c0_66, %c0_67, %c0_68], %201 {strides = array<i32>} : memref<2x8x32xf32, #tpu.memory_space<vmem>>, vector<2x8x32xf32>,
    return
  }
  func.func @transform_0(%arg0: i32) -> (i32, i32, i32) {
    %c0_i32 = arith.constant 0 : i32
    %c0_i32_0 = arith.constant 0 : i32
    %c0_i32_1 = arith.constant 0 : i32
    return %arg0, %c0_i32, %c0_i32_0 : i32, i32, i32
  }
  func.func @transform_1(%arg0: i32) -> (i32, i32, i32, i32) {
    %c0_i32 = arith.constant 0 : i32
    %c0_i32_0 = arith.constant 0 : i32
    %c0_i32_1 = arith.constant 0 : i32
    %c0_i32_2 = arith.constant 0 : i32
    return %arg0, %c0_i32, %c0_i32_0, %c0_i32_1 : i32, i32, i32, i32
  }
  func.func @transform_2(%arg0: i32) -> (i32, i32) {
    %c0_i32 = arith.constant 0 : i32
    %c0_i32_0 = arith.constant 0 : i32
    %c0_i32_1 = arith.constant 0 : i32
    return %c0_i32, %c0_i32_0 : i32, i32
  }
  func.func @transform_3(%arg0: i32) -> (i32, i32) {
    %c0_i32 = arith.constant 0 : i32
    %c0_i32_0 = arith.constant 0 : i32
    %c0_i32_1 = arith.constant 0 : i32
    return %c0_i32, %c0_i32_0 : i32, i32
  }
  func.func @transform_4(%arg0: i32) -> (i32, i32) {
    %c0_i32 = arith.constant 0 : i32
    %c0_i32_0 = arith.constant 0 : i32
    %c0_i32_1 = arith.constant 0 : i32
    return %c0_i32, %c0_i32_0 : i32, i32
  }
  func.func @transform_5(%arg0: i32) -> (i32, i32) {
    %c0_i32 = arith.constant 0 : i32
    %c0_i32_0 = arith.constant 0 : i32
    %c0_i32_1 = arith.constant 0 : i32
    return %c0_i32, %c0_i32_0 : i32, i32
  }
  func.func @transform_6(%arg0: i32) -> (i32, i32) {
    %c0_i32 = arith.constant 0 : i32
    %c0_i32_0 = arith.constant 0 : i32
    %c0_i32_1 = arith.constant 0 : i32
    return %c0_i32, %c0_i32_0 : i32, i32
  }
  func.func @transform_7(%arg0: i32) -> (i32, i32) {
    %c0_i32 = arith.constant 0 : i32
    %c0_i32_0 = arith.constant 0 : i32
    %c0_i32_1 = arith.constant 0 : i32
    return %c0_i32, %c0_i32_0 : i32, i32
  }
  func.func @transform_8(%arg0: i32) -> (i32, i32) {
    %c0_i32 = arith.constant 0 : i32
    %c0_i32_0 = arith.constant 0 : i32
    %c0_i32_1 = arith.constant 0 : i32
    return %c0_i32, %c0_i32_0 : i32, i32
  }
  func.func @transform_9(%arg0: i32) -> (i32, i32) {
    %c0_i32 = arith.constant 0 : i32
    %c0_i32_0 = arith.constant 0 : i32
    %c0_i32_1 = arith.constant 0 : i32
    return %c0_i32, %c0_i32_0 : i32, i32
  }
  func.func @transform_10(%arg0: i32) -> (i32, i32, i32) {
    %c0_i32 = arith.constant 0 : i32
    %c0_i32_0 = arith.constant 0 : i32
    %c0_i32_1 = arith.constant 0 : i32
    return %arg0, %c0_i32, %c0_i32_0 : i32, i32, i32
  }
}

</mosaic_0001>

<llo_original>
// kernel: tpu_custom_call.1
$region0: #{tpu_custom_call.1}
  #allocation0 [shape = 'u32[]', space=smem, size = 0x4, offset = 0x4, fixed_abs, tag = 'smem constant byte address 0x4 - core index']
  #allocation1 [shape = 'u32[144,128]{1,0:T(1,128)}', space=vmem, size = 0x12000, scoped, tag = 'internal scratch']
  %s0 = inlined_call_operand.vmem [shape: f32[2,8,32], index: 0, kind: input, shape index: {}]
  %s1 = inlined_call_operand.vmem [shape: f32[2,6,1,32], index: 1, kind: input, shape index: {}]
  %s2 = inlined_call_operand.vmem [shape: bf16[32,96], index: 2, kind: input, shape index: {}]
  %s3 = inlined_call_operand.vmem [shape: f32[1,96], index: 3, kind: input, shape index: {}]
  %s4 = inlined_call_operand.vmem [shape: bf16[32,32], index: 4, kind: input, shape index: {}]
  %s5 = inlined_call_operand.vmem [shape: f32[1,32], index: 5, kind: input, shape index: {}]
  %s6 = inlined_call_operand.vmem [shape: bf16[32,128], index: 6, kind: input, shape index: {}]
  %s7 = inlined_call_operand.vmem [shape: f32[1,128], index: 7, kind: input, shape index: {}]
  %s8 = inlined_call_operand.vmem [shape: bf16[128,32], index: 8, kind: input, shape index: {}]
  %s9 = inlined_call_operand.vmem [shape: f32[1,32], index: 9, kind: input, shape index: {}]
  %s10 = inlined_call_operand.hbm [shape: f32[2,8,32], index: 10, kind: output, shape index: {}]
  %s11 = sld [smem:[#allocation0]]
  $region50: #{tpu_custom_call.1} parent=0
    _
  %s13 = ssub.s32 1, %s11
  %s14 = scalar_select 0, %s13, %s11
  $region1: #{tpu_custom_call.1} parent=0
    #allocation2 [shape = 'u8[8192]{0}', space=vmem, size = 0x2000, scoped, tag = 'output window, operand 0, single buffered']
    #allocation3 [shape = 's32[1]{0}', space=sflag, size = 0x4, scoped, tag = 'scoped memory for tpu_custom_call.1']
    %15 = vsyncpa [#allocation3], 0
    // Predicated region
    $region2: #{tpu_custom_call.1} parent=1 // pred_check
      _
    $region3: #{tpu_custom_call.1} parent=1 // pred_check_branch
      %17 = sbr.rel (0) target = $region5
    $region4: #{tpu_custom_call.1} parent=1 // pred_region
      _
    $region5: #{tpu_custom_call.1} parent=1 // pred_fallthru
      _
    // Predicated region
    $region6: #{tpu_custom_call.1} parent=1 // pred_check
      _
    $region7: #{tpu_custom_call.1} parent=1 // pred_check_branch
      %19 = sbr.rel (0) target = $region9
    $region8: #{tpu_custom_call.1} parent=1 // pred_region
      _
    $region9: #{tpu_custom_call.1} parent=1 // pred_fallthru
      _
    // Predicated region
    $region10: #{tpu_custom_call.1} parent=1 // pred_check
      _
    $region11: #{tpu_custom_call.1} parent=1 // pred_check_branch
      %21 = sbr.rel (0) target = $region13
    $region12: #{tpu_custom_call.1} parent=1 // pred_region
      _
    $region13: #{tpu_custom_call.1} parent=1 // pred_fallthru
      _
    // Predicated region
    $region14: #{tpu_custom_call.1} parent=1 // pred_check
      _
    $region15: #{tpu_custom_call.1} parent=1 // pred_check_branch
      %23 = sbr.rel (0) target = $region17
    $region16: #{tpu_custom_call.1} parent=1 // pred_region
      _
    $region17: #{tpu_custom_call.1} parent=1 // pred_fallthru
      _
    // Predicated region
    $region18: #{tpu_custom_call.1} parent=1 // pred_check
      _
    $region19: #{tpu_custom_call.1} parent=1 // pred_check_branch
      %25 = sbr.rel (0) target = $region21
    $region20: #{tpu_custom_call.1} parent=1 // pred_region
      _
    $region21: #{tpu_custom_call.1} parent=1 // pred_fallthru
      _
    // Predicated region
    $region22: #{tpu_custom_call.1} parent=1 // pred_check
      _
    $region23: #{tpu_custom_call.1} parent=1 // pred_check_branch
      %27 = sbr.rel (0) target = $region25
    $region24: #{tpu_custom_call.1} parent=1 // pred_region
      _
    $region25: #{tpu_custom_call.1} parent=1 // pred_fallthru
      _
    // Predicated region
    $region26: #{tpu_custom_call.1} parent=1 // pred_check
      _
    $region27: #{tpu_custom_call.1} parent=1 // pred_check_branch
      %29 = sbr.rel (0) target = $region29
    $region28: #{tpu_custom_call.1} parent=1 // pred_region
      _
    $region29: #{tpu_custom_call.1} parent=1 // pred_fallthru
      _
    // Predicated region
    $region30: #{tpu_custom_call.1} parent=1 // pred_check
      _
    $region31: #{tpu_custom_call.1} parent=1 // pred_check_branch
      %31 = sbr.rel (0) target = $region33
    $region32: #{tpu_custom_call.1} parent=1 // pred_region
      _
    $region33: #{tpu_custom_call.1} parent=1 // pred_fallthru
      _
    // Predicated region
    $region34: #{tpu_custom_call.1} parent=1 // pred_check
      _
    $region35: #{tpu_custom_call.1} parent=1 // pred_check_branch
      %33 = sbr.rel (0) target = $region37
    $region36: #{tpu_custom_call.1} parent=1 // pred_region
      _
    $region37: #{tpu_custom_call.1} parent=1 // pred_fallthru
      _
    // Predicated region
    $region38: #{tpu_custom_call.1} parent=1 // pred_check
      _
    $region39: #{tpu_custom_call.1} parent=1 // pred_check_branch
      %35 = sbr.rel (0) target = $region41
    $region40: #{tpu_custom_call.1} parent=1 // pred_region
      _
    $region41: #{tpu_custom_call.1} parent=1 // pred_fallthru
      _
    %v37 = vld [vmem:[%s0] sm:$0xff]
    %v38 = vld [vmem:[%s0 + $0x8] sm:$0xff]
    %v39 = vld [vmem:[%s1] sm:$0x1]
    %v40 = vld [vmem:[%s1 + $0x1] sm:$0x1]
    %v41 = vld [vmem:[%s1 + $0x2] sm:$0x1]
    %v42 = vld [vmem:[%s1 + $0x3] sm:$0x1]
    %v43 = vld [vmem:[%s1 + $0x4] sm:$0x1]
    %v44 = vld [vmem:[%s1 + $0x5] sm:$0x1]
    %v45 = vld [vmem:[%s1 + $0x6] sm:$0x1]
    %v46 = vld [vmem:[%s1 + $0x7] sm:$0x1]
    %v47 = vld [vmem:[%s1 + $0x8] sm:$0x1]
    %v48 = vld [vmem:[%s1 + $0x9] sm:$0x1]
    %v49 = vld [vmem:[%s1 + $0xa] sm:$0x1]
    %v50 = vld [vmem:[%s1 + $0xb] sm:$0x1]
    %vm51 = vcmask 261120
    %v52 = vsel %vm51, %v37, 0.0
    %53 = vadd.xlane.f32.xlu0 %v52
    %v54 = vpop.xlane.xlu0 %53
    %v55 = vsel %vm51, %v38, 0.0
    %56 = vadd.xlane.f32.xlu0 %v55
    %v57 = vpop.xlane.xlu0 %56
    %v58 = vrcp.pop 32.0
    %v59 = vmul.f32 %v54, %v58
    %v60 = vmul.f32 %v57, %v58
    %v61 = vsub.f32 %v37, %v59
    %v62 = vsub.f32 %v38, %v60
    %v63 = vmul.f32 %v61, %v61
    %v64 = vmul.f32 %v62, %v62
    %v65 = vsel %vm51, %v63, 0.0
    %66 = vadd.xlane.f32.xlu0 %v65
    %v67 = vpop.xlane.xlu0 %66
    %v68 = vsel %vm51, %v64, 0.0
    %69 = vadd.xlane.f32.xlu0 %v68
    %v70 = vpop.xlane.xlu0 %69
    %v71 = vmul.f32 %v67, %v58
    %v72 = vmul.f32 %v70, %v58
    %v73 = vadd.f32 %v71, 1e-06
    %v74 = vadd.f32 %v72, 1e-06
    %v75 = vrsqrt.pop %v73
    %v76 = vrsqrt.pop %v74
    %v77 = vmul.f32 %v61, %v75
    %v78 = vmul.f32 %v62, %v76
    %v81 = vlaneseq
    %v82 = vshrl.u32 %v81, 7
    %v83 = vsub.s32 0, %v82
    %v84 = vrot.slane %v39, %v83
    %v85 = vlaneseq
    %v86 = vshrl.u32 %v85, 7
    %v87 = vsub.s32 0, %v86
    %v88 = vrot.slane %v45, %v87
    %v91 = vmul.f32 %v84, %v77
    %v92 = vmul.f32 %v88, %v78
    %v95 = vlaneseq
    %v96 = vshrl.u32 %v95, 7
    %v97 = vsub.s32 0, %v96
    %v98 = vrot.slane %v40, %v97
    %v99 = vlaneseq
    %v100 = vshrl.u32 %v99, 7
    %v101 = vsub.s32 0, %v100
    %v102 = vrot.slane %v46, %v101
    %v105 = vadd.f32 %v91, %v98
    %v106 = vadd.f32 %v92, %v102
    %v107 = vpack.c.bf16 %v106, %v105
    %v108 = vld [vmem:[%s2] sm:$0xf]
    %v109 = vld [vmem:[%s2 + $0x4] sm:$0xf]
    %v110 = vld [vmem:[%s2 + $0x8] sm:$0xf]
    %v111 = vld [vmem:[%s2 + $0xc] sm:$0xf]
    %v112 = vld [vmem:[%s3] sm:$0x1]
    %v114 = vlaneseq
    %v115 = vshrl.u32 %v114, 7
    %v116 = vsub.s32 0, %v115
    %v117 = vrot.slane %v112, %v116
    %v123 = vunpack.c.l.b16 %v108
    %v124 = vunpack.c.l.b16 %v109
    %v125 = vunpack.c.l.b16 %v110
    %v126 = vunpack.c.l.b16 %v111
    %v127 = vpack.c.b16 %v124, %v123
    %v128 = vpack.c.b16 %v126, %v125
    %v132 = vsel %vm51, %v107, 0
    %134 = vmatprep.subr.bf16.mxu0 0
    %135 = vmatpush1.bf16.msra.mxu0 %v127
    %136 = vmatprep.subr.bf16.mxu0 0
    %137 = vmatpush1.bf16.msra.mxu0 %v128
    %138 = vmatprep.subr.bf16.mxu0 0
    %139 = vmatpush1.bf16.msra.mxu0 0
    %140 = vmatprep.subr.bf16.mxu0 0
    %141 = vmatpush1.bf16.msra.mxu0 0
    %142 = vmatprep.subr.bf16.mxu0 0
    %143 = vmatpush1.bf16.msra.mxu0 0
    %144 = vmatprep.subr.bf16.mxu0 0
    %145 = vmatpush1.bf16.msra.mxu0 0
    %146 = vmatprep.subr.bf16.mxu0 0
    %147 = vmatpush1.bf16.msra.mxu0 0
    %148 = vmatprep.subr.bf16.mxu0 0
    %149 = vmatpush1.bf16.msra.mxu0 0
    %150 = vmatprep.subr.bf16.mxu0 0
    %151 = vmatpush1.bf16.msra.mxu0 0
    %152 = vmatprep.subr.bf16.mxu0 0
    %153 = vmatpush1.bf16.msra.mxu0 0
    %154 = vmatprep.subr.bf16.mxu0 0
    %155 = vmatpush1.bf16.msra.mxu0 0
    %156 = vmatprep.subr.bf16.mxu0 0
    %157 = vmatpush1.bf16.msra.mxu0 0
    %158 = vmatprep.subr.bf16.mxu0 0
    %159 = vmatpush1.bf16.msra.mxu0 0
    %160 = vmatprep.subr.bf16.mxu0 0
    %161 = vmatpush1.bf16.msra.mxu0 0
    %162 = vmatprep.subr.bf16.mxu0 0
    %163 = vmatpush1.bf16.msra.mxu0 0
    %164 = vmatprep.subr.bf16.mxu0 0
    %165 = vmatpush1.bf16.msra.mxu0 0
    %166 = vmatprep.mubr.bf16.mxu0 0
    %167 = vmatmul.mubr.bf16.gmra.mrb[0].mxu0 %v132
    %v168 = vpop.f32.mrb[0].mxu0
    %v169 = vadd.f32 %v117, %v168
    %v170 = vpop.f32.mrb[0].mxu0
    %v171 = vpop.f32.mrb[0].mxu0
    %v172 = vadd.f32 %v117, %v171
    %v173 = vpop.f32.mrb[0].mxu0
    %174 = vdwg.mxu0
    %v175 = vpack.c.bf16 %v169, %v169
    %v176 = vpack.c.bf16 %v172, %v172
    %178 = vrot.lane.b32.xlu0 %v175, 96
    %v179 = vpop.permute.xlu0 %178
    %vm180 = vcmask 64512
    %v182 = vsel %vm180, %v175, 0
    %v185 = vsel %vm180, %v179, 0
    %187 = vmatprep.subr.bf16.mxu0 0
    %188 = vmatpush1.bf16.xpose.msra.mxu0 %v185
    %189 = vmatprep.subr.bf16.mxu0 0
    %190 = vmatpush1.bf16.xpose.msra.mxu0 0
    %191 = vmatprep.subr.bf16.mxu0 0
    %192 = vmatpush1.bf16.xpose.msra.mxu0 0
    %193 = vmatprep.subr.bf16.mxu0 0
    %194 = vmatpush1.bf16.xpose.msra.mxu0 0
    %195 = vmatprep.subr.bf16.mxu0 0
    %196 = vmatpush1.bf16.xpose.msra.mxu0 0
    %197 = vmatprep.subr.bf16.mxu0 0
    %198 = vmatpush1.bf16.xpose.msra.mxu0 0
    %199 = vmatprep.subr.bf16.mxu0 0
    %200 = vmatpush1.bf16.xpose.msra.mxu0 0
    %201 = vmatprep.subr.bf16.mxu0 0
    %202 = vmatpush1.bf16.xpose.msra.mxu0 0
    %203 = vmatprep.subr.bf16.mxu0 0
    %204 = vmatpush1.bf16.xpose.msra.mxu0 0
    %205 = vmatprep.subr.bf16.mxu0 0
    %206 = vmatpush1.bf16.xpose.msra.mxu0 0
    %207 = vmatprep.subr.bf16.mxu0 0
    %208 = vmatpush1.bf16.xpose.msra.mxu0 0
    %209 = vmatprep.subr.bf16.mxu0 0
    %210 = vmatpush1.bf16.xpose.msra.mxu0 0
    %211 = vmatprep.subr.bf16.mxu0 0
    %212 = vmatpush1.bf16.xpose.msra.mxu0 0
    %213 = vmatprep.subr.bf16.mxu0 0
    %214 = vmatpush1.bf16.xpose.msra.mxu0 0
    %215 = vmatprep.subr.bf16.mxu0 0
    %216 = vmatpush1.bf16.xpose.msra.mxu0 0
    %217 = vmatprep.subr.bf16.mxu0 0
    %218 = vmatpush1.bf16.xpose.msra.mxu0 0
    %219 = vmatprep.mubr.bf16.mxu0 0
    %220 = vmatmul.mubr.bf16.gmra.mrb[0].mxu0 %v182
    %v221 = vpop.f32.mrb[0].mxu0
    %v222 = vadd.f32 0.0, %v221
    %v223 = vpop.f32.mrb[0].mxu0
    %v224 = vpop.f32.mrb[0].mxu0
    %v225 = vpop.f32.mrb[0].mxu0
    %226 = vdwg.mxu0
    %228 = vrot.lane.b32.xlu0 %v176, 96
    %v229 = vpop.permute.xlu0 %228
    %v231 = vsel %vm180, %v176, 0
    %v234 = vsel %vm180, %v229, 0
    %236 = vmatprep.subr.bf16.mxu0 0
    %237 = vmatpush1.bf16.xpose.msra.mxu0 %v234
    %238 = vmatprep.subr.bf16.mxu0 0
    %239 = vmatpush1.bf16.xpose.msra.mxu0 0
    %240 = vmatprep.subr.bf16.mxu0 0
    %241 = vmatpush1.bf16.xpose.msra.mxu0 0
    %242 = vmatprep.subr.bf16.mxu0 0
    %243 = vmatpush1.bf16.xpose.msra.mxu0 0
    %244 = vmatprep.subr.bf16.mxu0 0
    %245 = vmatpush1.bf16.xpose.msra.mxu0 0
    %246 = vmatprep.subr.bf16.mxu0 0
    %247 = vmatpush1.bf16.xpose.msra.mxu0 0
    %248 = vmatprep.subr.bf16.mxu0 0
    %249 = vmatpush1.bf16.xpose.msra.mxu0 0
    %250 = vmatprep.subr.bf16.mxu0 0
    %251 = vmatpush1.bf16.xpose.msra.mxu0 0
    %252 = vmatprep.subr.bf16.mxu0 0
    %253 = vmatpush1.bf16.xpose.msra.mxu0 0
    %254 = vmatprep.subr.bf16.mxu0 0
    %255 = vmatpush1.bf16.xpose.msra.mxu0 0
    %256 = vmatprep.subr.bf16.mxu0 0
    %257 = vmatpush1.bf16.xpose.msra.mxu0 0
    %258 = vmatprep.subr.bf16.mxu0 0
    %259 = vmatpush1.bf16.xpose.msra.mxu0 0
    %260 = vmatprep.subr.bf16.mxu0 0
    %261 = vmatpush1.bf16.xpose.msra.mxu0 0
    %262 = vmatprep.subr.bf16.mxu0 0
    %263 = vmatpush1.bf16.xpose.msra.mxu0 0
    %264 = vmatprep.subr.bf16.mxu0 0
    %265 = vmatpush1.bf16.xpose.msra.mxu0 0
    %266 = vmatprep.subr.bf16.mxu0 0
    %267 = vmatpush1.bf16.xpose.msra.mxu0 0
    %268 = vmatprep.mubr.bf16.mxu0 0
    %269 = vmatmul.mubr.bf16.gmra.mrb[0].mxu0 %v231
    %v270 = vpop.f32.mrb[0].mxu0
    %v271 = vadd.f32 0.0, %v270
    %v272 = vpop.f32.mrb[0].mxu0
    %v273 = vpop.f32.mrb[0].mxu0
    %v274 = vpop.f32.mrb[0].mxu0
    %275 = vdwg.mxu0
    %v276 = vmul.f32 %v222, 0.35355338
    %v277 = vmul.f32 %v271, 0.35355338
    %v278 = vsel %vm180, %v276, -inf
    %279 = vmax.xlane.f32.xlu0 %v278
    %v280 = vpop.xlane.xlu0 %279
    %v281 = vsel %vm180, %v277, -inf
    %282 = vmax.xlane.f32.xlu0 %v281
    %v283 = vpop.xlane.xlu0 %282
    %v284 = vsub.f32 %v276, %v280
    %v285 = vsub.f32 %v277, %v283
    %v286 = vmul.f32 %v284, 1.442695
    %v287 = vpow.pop %v286
    %v288 = vmul.f32 %v285, 1.442695
    %v289 = vpow.pop %v288
    %v290 = vsel %vm180, %v287, 0.0
    %291 = vadd.xlane.f32.xlu0 %v290
    %v292 = vpop.xlane.xlu0 %291
    %v293 = vsel %vm180, %v289, 0.0
    %294 = vadd.xlane.f32.xlu0 %v293
    %v295 = vpop.xlane.xlu0 %294
    %v296 = vrcp.pop %v292
    %v297 = vrcp.pop %v295
    %v298 = vmul.f32 %v287, %v296
    %v299 = vmul.f32 %v289, %v297
    %v300 = vpack.c.bf16 %v298, %v298
    %v301 = vpack.c.bf16 %v299, %v299
    %302 = vrot.lane.b32.xlu0 %v175, 64
    %v303 = vpop.permute.xlu0 %302
    %v305 = vsel %vm180, %v300, 0
    %vm307 = vcmask 1043456
    %v309 = vsel %vm307, %v303, 0
    %311 = vmatprep.subr.bf16.mxu0 0
    %312 = vmatpush1.bf16.msra.mxu0 %v309
    %313 = vmatprep.subr.bf16.mxu0 0
    %314 = vmatpush1.bf16.msra.mxu0 0
    %315 = vmatprep.subr.bf16.mxu0 0
    %316 = vmatpush1.bf16.msra.mxu0 0
    %317 = vmatprep.subr.bf16.mxu0 0
    %318 = vmatpush1.bf16.msra.mxu0 0
    %319 = vmatprep.subr.bf16.mxu0 0
    %320 = vmatpush1.bf16.msra.mxu0 0
    %321 = vmatprep.subr.bf16.mxu0 0
    %322 = vmatpush1.bf16.msra.mxu0 0
    %323 = vmatprep.subr.bf16.mxu0 0
    %324 = vmatpush1.bf16.msra.mxu0 0
    %325 = vmatprep.subr.bf16.mxu0 0
    %326 = vmatpush1.bf16.msra.mxu0 0
    %327 = vmatprep.subr.bf16.mxu0 0
    %328 = vmatpush1.bf16.msra.mxu0 0
    %329 = vmatprep.subr.bf16.mxu0 0
    %330 = vmatpush1.bf16.msra.mxu0 0
    %331 = vmatprep.subr.bf16.mxu0 0
    %332 = vmatpush1.bf16.msra.mxu0 0
    %333 = vmatprep.subr.bf16.mxu0 0
    %334 = vmatpush1.bf16.msra.mxu0 0
    %335 = vmatprep.subr.bf16.mxu0 0
    %336 = vmatpush1.bf16.msra.mxu0 0
    %337 = vmatprep.subr.bf16.mxu0 0
    %338 = vmatpush1.bf16.msra.mxu0 0
    %339 = vmatprep.subr.bf16.mxu0 0
    %340 = vmatpush1.bf16.msra.mxu0 0
    %341 = vmatprep.subr.bf16.mxu0 0
    %342 = vmatpush1.bf16.msra.mxu0 0
    %343 = vmatprep.mubr.bf16.mxu0 0
    %344 = vmatmul.mubr.bf16.gmra.mrb[0].mxu0 %v305
    %v345 = vpop.f32.mrb[0].mxu0
    %v346 = vadd.f32 0.0, %v345
    %v347 = vpop.f32.mrb[0].mxu0
    %v348 = vpop.f32.mrb[0].mxu0
    %v349 = vpop.f32.mrb[0].mxu0
    %350 = vdwg.mxu0
    %351 = vrot.lane.b32.xlu0 %v176, 64
    %v352 = vpop.permute.xlu0 %351
    %v354 = vsel %vm180, %v301, 0
    %v357 = vsel %vm307, %v352, 0
    %359 = vmatprep.subr.bf16.mxu0 0
    %360 = vmatpush1.bf16.msra.mxu0 %v357
    %361 = vmatprep.subr.bf16.mxu0 0
    %362 = vmatpush1.bf16.msra.mxu0 0
    %363 = vmatprep.subr.bf16.mxu0 0
    %364 = vmatpush1.bf16.msra.mxu0 0
    %365 = vmatprep.subr.bf16.mxu0 0
    %366 = vmatpush1.bf16.msra.mxu0 0
    %367 = vmatprep.subr.bf16.mxu0 0
    %368 = vmatpush1.bf16.msra.mxu0 0
    %369 = vmatprep.subr.bf16.mxu0 0
    %370 = vmatpush1.bf16.msra.mxu0 0
    %371 = vmatprep.subr.bf16.mxu0 0
    %372 = vmatpush1.bf16.msra.mxu0 0
    %373 = vmatprep.subr.bf16.mxu0 0
    %374 = vmatpush1.bf16.msra.mxu0 0
    %375 = vmatprep.subr.bf16.mxu0 0
    %376 = vmatpush1.bf16.msra.mxu0 0
    %377 = vmatprep.subr.bf16.mxu0 0
    %378 = vmatpush1.bf16.msra.mxu0 0
    %379 = vmatprep.subr.bf16.mxu0 0
    %380 = vmatpush1.bf16.msra.mxu0 0
    %381 = vmatprep.subr.bf16.mxu0 0
    %382 = vmatpush1.bf16.msra.mxu0 0
    %383 = vmatprep.subr.bf16.mxu0 0
    %384 = vmatpush1.bf16.msra.mxu0 0
    %385 = vmatprep.subr.bf16.mxu0 0
    %386 = vmatpush1.bf16.msra.mxu0 0
    %387 = vmatprep.subr.bf16.mxu0 0
    %388 = vmatpush1.bf16.msra.mxu0 0
    %389 = vmatprep.subr.bf16.mxu0 0
    %390 = vmatpush1.bf16.msra.mxu0 0
    %391 = vmatprep.mubr.bf16.mxu0 0
    %392 = vmatmul.mubr.bf16.gmra.mrb[0].mxu0 %v354
    %v393 = vpop.f32.mrb[0].mxu0
    %v394 = vadd.f32 0.0, %v393
    %v395 = vpop.f32.mrb[0].mxu0
    %v396 = vpop.f32.mrb[0].mxu0
    %v397 = vpop.f32.mrb[0].mxu0
    %398 = vdwg.mxu0
    %v399 = vpack.c.bf16 %v394, %v346
    %v400 = vld [vmem:[%s4] sm:$0xf]
    %401 = vrot.lane.b32.xlu0 %v175, 120
    %v402 = vpop.permute.xlu0 %401
    %403 = vrot.lane.b32.xlu0 %v175, 88
    %v404 = vpop.permute.xlu0 %403
    %v406 = vsel %vm180, %v402, 0
    %v409 = vsel %vm180, %v404, 0
    %411 = vmatprep.subr.bf16.mxu0 0
    %412 = vmatpush1.bf16.xpose.msra.mxu0 %v409
    %413 = vmatprep.subr.bf16.mxu0 0
    %414 = vmatpush1.bf16.xpose.msra.mxu0 0
    %415 = vmatprep.subr.bf16.mxu0 0
    %416 = vmatpush1.bf16.xpose.msra.mxu0 0
    %417 = vmatprep.subr.bf16.mxu0 0
    %418 = vmatpush1.bf16.xpose.msra.mxu0 0
    %419 = vmatprep.subr.bf16.mxu0 0
    %420 = vmatpush1.bf16.xpose.msra.mxu0 0
    %421 = vmatprep.subr.bf16.mxu0 0
    %422 = vmatpush1.bf16.xpose.msra.mxu0 0
    %423 = vmatprep.subr.bf16.mxu0 0
    %424 = vmatpush1.bf16.xpose.msra.mxu0 0
    %425 = vmatprep.subr.bf16.mxu0 0
    %426 = vmatpush1.bf16.xpose.msra.mxu0 0
    %427 = vmatprep.subr.bf16.mxu0 0
    %428 = vmatpush1.bf16.xpose.msra.mxu0 0
    %429 = vmatprep.subr.bf16.mxu0 0
    %430 = vmatpush1.bf16.xpose.msra.mxu0 0
    %431 = vmatprep.subr.bf16.mxu0 0
    %432 = vmatpush1.bf16.xpose.msra.mxu0 0
    %433 = vmatprep.subr.bf16.mxu0 0
    %434 = vmatpush1.bf16.xpose.msra.mxu0 0
    %435 = vmatprep.subr.bf16.mxu0 0
    %436 = vmatpush1.bf16.xpose.msra.mxu0 0
    %437 = vmatprep.subr.bf16.mxu0 0
    %438 = vmatpush1.bf16.xpose.msra.mxu0 0
    %439 = vmatprep.subr.bf16.mxu0 0
    %440 = vmatpush1.bf16.xpose.msra.mxu0 0
    %441 = vmatprep.subr.bf16.mxu0 0
    %442 = vmatpush1.bf16.xpose.msra.mxu0 0
    %443 = vmatprep.mubr.bf16.mxu0 0
    %444 = vmatmul.mubr.bf16.gmra.mrb[0].mxu0 %v406
    %v445 = vpop.f32.mrb[0].mxu0
    %v446 = vadd.f32 0.0, %v445
    %v447 = vpop.f32.mrb[0].mxu0
    %v448 = vpop.f32.mrb[0].mxu0
    %v449 = vpop.f32.mrb[0].mxu0
    %450 = vdwg.mxu0
    %451 = vrot.lane.b32.xlu0 %v176, 120
    %v452 = vpop.permute.xlu0 %451
    %453 = vrot.lane.b32.xlu0 %v176, 88
    %v454 = vpop.permute.xlu0 %453
    %v456 = vsel %vm180, %v452, 0
    %v459 = vsel %vm180, %v454, 0
    %461 = vmatprep.subr.bf16.mxu0 0
    %462 = vmatpush1.bf16.xpose.msra.mxu0 %v459
    %463 = vmatprep.subr.bf16.mxu0 0
    %464 = vmatpush1.bf16.xpose.msra.mxu0 0
    %465 = vmatprep.subr.bf16.mxu0 0
    %466 = vmatpush1.bf16.xpose.msra.mxu0 0
    %467 = vmatprep.subr.bf16.mxu0 0
    %468 = vmatpush1.bf16.xpose.msra.mxu0 0
    %469 = vmatprep.subr.bf16.mxu0 0
    %470 = vmatpush1.bf16.xpose.msra.mxu0 0
    %471 = vmatprep.subr.bf16.mxu0 0
    %472 = vmatpush1.bf16.xpose.msra.mxu0 0
    %473 = vmatprep.subr.bf16.mxu0 0
    %474 = vmatpush1.bf16.xpose.msra.mxu0 0
    %475 = vmatprep.subr.bf16.mxu0 0
    %476 = vmatpush1.bf16.xpose.msra.mxu0 0
    %477 = vmatprep.subr.bf16.mxu0 0
    %478 = vmatpush1.bf16.xpose.msra.mxu0 0
    %479 = vmatprep.subr.bf16.mxu0 0
    %480 = vmatpush1.bf16.xpose.msra.mxu0 0
    %481 = vmatprep.subr.bf16.mxu0 0
    %482 = vmatpush1.bf16.xpose.msra.mxu0 0
    %483 = vmatprep.subr.bf16.mxu0 0
    %484 = vmatpush1.bf16.xpose.msra.mxu0 0
    %485 = vmatprep.subr.bf16.mxu0 0
    %486 = vmatpush1.bf16.xpose.msra.mxu0 0
    %487 = vmatprep.subr.bf16.mxu0 0
    %488 = vmatpush1.bf16.xpose.msra.mxu0 0
    %489 = vmatprep.subr.bf16.mxu0 0
    %490 = vmatpush1.bf16.xpose.msra.mxu0 0
    %491 = vmatprep.subr.bf16.mxu0 0
    %492 = vmatpush1.bf16.xpose.msra.mxu0 0
    %493 = vmatprep.mubr.bf16.mxu0 0
    %494 = vmatmul.mubr.bf16.gmra.mrb[0].mxu0 %v456
    %v495 = vpop.f32.mrb[0].mxu0
    %v496 = vadd.f32 0.0, %v495
    %v497 = vpop.f32.mrb[0].mxu0
    %v498 = vpop.f32.mrb[0].mxu0
    %v499 = vpop.f32.mrb[0].mxu0
    %500 = vdwg.mxu0
    %v501 = vmul.f32 %v446, 0.35355338
    %v502 = vmul.f32 %v496, 0.35355338
    %v503 = vsel %vm180, %v501, -inf
    %504 = vmax.xlane.f32.xlu0 %v503
    %v505 = vpop.xlane.xlu0 %504
    %v506 = vsel %vm180, %v502, -inf
    %507 = vmax.xlane.f32.xlu0 %v506
    %v508 = vpop.xlane.xlu0 %507
    %v509 = vsub.f32 %v501, %v505
    %v510 = vsub.f32 %v502, %v508
    %v511 = vmul.f32 %v509, 1.442695
    %v512 = vpow.pop %v511
    %v513 = vmul.f32 %v510, 1.442695
    %v514 = vpow.pop %v513
    %v515 = vsel %vm180, %v512, 0.0
    %516 = vadd.xlane.f32.xlu0 %v515
    %v517 = vpop.xlane.xlu0 %516
    %v518 = vsel %vm180, %v514, 0.0
    %519 = vadd.xlane.f32.xlu0 %v518
    %v520 = vpop.xlane.xlu0 %519
    %v521 = vrcp.pop %v517
    %v522 = vrcp.pop %v520
    %v523 = vmul.f32 %v512, %v521
    %v524 = vmul.f32 %v514, %v522
    %v525 = vpack.c.bf16 %v523, %v523
    %v526 = vpack.c.bf16 %v524, %v524
    %527 = vrot.lane.b32.xlu0 %v175, 56
    %v528 = vpop.permute.xlu0 %527
    %v530 = vsel %vm180, %v525, 0
    %v533 = vsel %vm307, %v528, 0
    %535 = vmatprep.subr.bf16.mxu0 0
    %536 = vmatpush1.bf16.msra.mxu0 %v533
    %537 = vmatprep.subr.bf16.mxu0 0
    %538 = vmatpush1.bf16.msra.mxu0 0
    %539 = vmatprep.subr.bf16.mxu0 0
    %540 = vmatpush1.bf16.msra.mxu0 0
    %541 = vmatprep.subr.bf16.mxu0 0
    %542 = vmatpush1.bf16.msra.mxu0 0
    %543 = vmatprep.subr.bf16.mxu0 0
    %544 = vmatpush1.bf16.msra.mxu0 0
    %545 = vmatprep.subr.bf16.mxu0 0
    %546 = vmatpush1.bf16.msra.mxu0 0
    %547 = vmatprep.subr.bf16.mxu0 0
    %548 = vmatpush1.bf16.msra.mxu0 0
    %549 = vmatprep.subr.bf16.mxu0 0
    %550 = vmatpush1.bf16.msra.mxu0 0
    %551 = vmatprep.subr.bf16.mxu0 0
    %552 = vmatpush1.bf16.msra.mxu0 0
    %553 = vmatprep.subr.bf16.mxu0 0
    %554 = vmatpush1.bf16.msra.mxu0 0
    %555 = vmatprep.subr.bf16.mxu0 0
    %556 = vmatpush1.bf16.msra.mxu0 0
    %557 = vmatprep.subr.bf16.mxu0 0
    %558 = vmatpush1.bf16.msra.mxu0 0
    %559 = vmatprep.subr.bf16.mxu0 0
    %560 = vmatpush1.bf16.msra.mxu0 0
    %561 = vmatprep.subr.bf16.mxu0 0
    %562 = vmatpush1.bf16.msra.mxu0 0
    %563 = vmatprep.subr.bf16.mxu0 0
    %564 = vmatpush1.bf16.msra.mxu0 0
    %565 = vmatprep.subr.bf16.mxu0 0
    %566 = vmatpush1.bf16.msra.mxu0 0
    %567 = vmatprep.mubr.bf16.mxu0 0
    %568 = vmatmul.mubr.bf16.gmra.mrb[0].mxu0 %v530
    %v569 = vpop.f32.mrb[0].mxu0
    %v570 = vadd.f32 0.0, %v569
    %v571 = vpop.f32.mrb[0].mxu0
    %v572 = vpop.f32.mrb[0].mxu0
    %v573 = vpop.f32.mrb[0].mxu0
    %574 = vdwg.mxu0
    %575 = vrot.lane.b32.xlu0 %v176, 56
    %v576 = vpop.permute.xlu0 %575
    %v578 = vsel %vm180, %v526, 0
    %v581 = vsel %vm307, %v576, 0
    %583 = vmatprep.subr.bf16.mxu0 0
    %584 = vmatpush1.bf16.msra.mxu0 %v581
    %585 = vmatprep.subr.bf16.mxu0 0
    %586 = vmatpush1.bf16.msra.mxu0 0
    %587 = vmatprep.subr.bf16.mxu0 0
    %588 = vmatpush1.bf16.msra.mxu0 0
    %589 = vmatprep.subr.bf16.mxu0 0
    %590 = vmatpush1.bf16.msra.mxu0 0
    %591 = vmatprep.subr.bf16.mxu0 0
    %592 = vmatpush1.bf16.msra.mxu0 0
    %593 = vmatprep.subr.bf16.mxu0 0
    %594 = vmatpush1.bf16.msra.mxu0 0
    %595 = vmatprep.subr.bf16.mxu0 0
    %596 = vmatpush1.bf16.msra.mxu0 0
    %597 = vmatprep.subr.bf16.mxu0 0
    %598 = vmatpush1.bf16.msra.mxu0 0
    %599 = vmatprep.subr.bf16.mxu0 0
    %600 = vmatpush1.bf16.msra.mxu0 0
    %601 = vmatprep.subr.bf16.mxu0 0
    %602 = vmatpush1.bf16.msra.mxu0 0
    %603 = vmatprep.subr.bf16.mxu0 0
    %604 = vmatpush1.bf16.msra.mxu0 0
    %605 = vmatprep.subr.bf16.mxu0 0
    %606 = vmatpush1.bf16.msra.mxu0 0
    %607 = vmatprep.subr.bf16.mxu0 0
    %608 = vmatpush1.bf16.msra.mxu0 0
    %609 = vmatprep.subr.bf16.mxu0 0
    %610 = vmatpush1.bf16.msra.mxu0 0
    %611 = vmatprep.subr.bf16.mxu0 0
    %612 = vmatpush1.bf16.msra.mxu0 0
    %613 = vmatprep.subr.bf16.mxu0 0
    %614 = vmatpush1.bf16.msra.mxu0 0
    %615 = vmatprep.mubr.bf16.mxu0 0
    %616 = vmatmul.mubr.bf16.gmra.mrb[0].mxu0 %v578
    %v617 = vpop.f32.mrb[0].mxu0
    %v618 = vadd.f32 0.0, %v617
    %v619 = vpop.f32.mrb[0].mxu0
    %v620 = vpop.f32.mrb[0].mxu0
    %v621 = vpop.f32.mrb[0].mxu0
    %622 = vdwg.mxu0
    %v623 = vpack.c.bf16 %v618, %v570
    %v624 = vld [vmem:[%s4 + $0x4] sm:$0xf]
    %v626 = vsel %vm180, %v623, 0
    %v629 = vsel %vm307, %v624, 0
    %631 = vmatprep.subr.bf16.mxu0 0
    %632 = vmatpush1.bf16.msra.mxu0 %v629
    %633 = vmatprep.subr.bf16.mxu0 0
    %634 = vmatpush1.bf16.msra.mxu0 0
    %635 = vmatprep.subr.bf16.mxu0 0
    %636 = vmatpush1.bf16.msra.mxu0 0
    %637 = vmatprep.subr.bf16.mxu0 0
    %638 = vmatpush1.bf16.msra.mxu0 0
    %639 = vmatprep.subr.bf16.mxu0 0
    %640 = vmatpush1.bf16.msra.mxu0 0
    %641 = vmatprep.subr.bf16.mxu0 0
    %642 = vmatpush1.bf16.msra.mxu0 0
    %643 = vmatprep.subr.bf16.mxu0 0
    %644 = vmatpush1.bf16.msra.mxu0 0
    %645 = vmatprep.subr.bf16.mxu0 0
    %646 = vmatpush1.bf16.msra.mxu0 0
    %647 = vmatprep.subr.bf16.mxu0 0
    %648 = vmatpush1.bf16.msra.mxu0 0
    %649 = vmatprep.subr.bf16.mxu0 0
    %650 = vmatpush1.bf16.msra.mxu0 0
    %651 = vmatprep.subr.bf16.mxu0 0
    %652 = vmatpush1.bf16.msra.mxu0 0
    %653 = vmatprep.subr.bf16.mxu0 0
    %654 = vmatpush1.bf16.msra.mxu0 0
    %655 = vmatprep.subr.bf16.mxu0 0
    %656 = vmatpush1.bf16.msra.mxu0 0
    %657 = vmatprep.subr.bf16.mxu0 0
    %658 = vmatpush1.bf16.msra.mxu0 0
    %659 = vmatprep.subr.bf16.mxu0 0
    %660 = vmatpush1.bf16.msra.mxu0 0
    %661 = vmatprep.subr.bf16.mxu0 0
    %662 = vmatpush1.bf16.msra.mxu0 0
    %663 = vmatprep.mubr.bf16.mxu0 0
    %664 = vmatmul.mubr.bf16.gmra.mrb[0].mxu0 %v626
    %v665 = vpop.f32.mrb[0].mxu0
    %v666 = vadd.f32 0.0, %v665
    %v667 = vpop.f32.mrb[0].mxu0
    %v668 = vpop.f32.mrb[0].mxu0
    %v669 = vadd.f32 0.0, %v668
    %v670 = vpop.f32.mrb[0].mxu0
    %671 = vdwg.mxu0
    %v673 = vsel %vm180, %v399, 0
    %v676 = vsel %vm307, %v400, 0
    %678 = vmatprep.subr.bf16.mxu0 0
    %679 = vmatpush1.bf16.msra.mxu0 %v676
    %680 = vmatprep.subr.bf16.mxu0 0
    %681 = vmatpush1.bf16.msra.mxu0 0
    %682 = vmatprep.subr.bf16.mxu0 0
    %683 = vmatpush1.bf16.msra.mxu0 0
    %684 = vmatprep.subr.bf16.mxu0 0
    %685 = vmatpush1.bf16.msra.mxu0 0
    %686 = vmatprep.subr.bf16.mxu0 0
    %687 = vmatpush1.bf16.msra.mxu0 0
    %688 = vmatprep.subr.bf16.mxu0 0
    %689 = vmatpush1.bf16.msra.mxu0 0
    %690 = vmatprep.subr.bf16.mxu0 0
    %691 = vmatpush1.bf16.msra.mxu0 0
    %692 = vmatprep.subr.bf16.mxu0 0
    %693 = vmatpush1.bf16.msra.mxu0 0
    %694 = vmatprep.subr.bf16.mxu0 0
    %695 = vmatpush1.bf16.msra.mxu0 0
    %696 = vmatprep.subr.bf16.mxu0 0
    %697 = vmatpush1.bf16.msra.mxu0 0
    %698 = vmatprep.subr.bf16.mxu0 0
    %699 = vmatpush1.bf16.msra.mxu0 0
    %700 = vmatprep.subr.bf16.mxu0 0
    %701 = vmatpush1.bf16.msra.mxu0 0
    %702 = vmatprep.subr.bf16.mxu0 0
    %703 = vmatpush1.bf16.msra.mxu0 0
    %704 = vmatprep.subr.bf16.mxu0 0
    %705 = vmatpush1.bf16.msra.mxu0 0
    %706 = vmatprep.subr.bf16.mxu0 0
    %707 = vmatpush1.bf16.msra.mxu0 0
    %708 = vmatprep.subr.bf16.mxu0 0
    %709 = vmatpush1.bf16.msra.mxu0 0
    %710 = vmatprep.mubr.bf16.mxu0 0
    %711 = vmatmul.mubr.bf16.gmra.mrb[0].mxu0 %v673
    %v712 = vpop.f32.mrb[0].mxu0
    %v713 = vadd.f32 %v666, %v712
    %v714 = vpop.f32.mrb[0].mxu0
    %v715 = vpop.f32.mrb[0].mxu0
    %v716 = vadd.f32 %v669, %v715
    %v717 = vpop.f32.mrb[0].mxu0
    %718 = vdwg.mxu0
    %719 = vrot.lane.b32.xlu0 %v175, 112
    %v720 = vpop.permute.xlu0 %719
    %721 = vrot.lane.b32.xlu0 %v175, 80
    %v722 = vpop.permute.xlu0 %721
    %v724 = vsel %vm180, %v720, 0
    %v727 = vsel %vm180, %v722, 0
    %729 = vmatprep.subr.bf16.mxu0 0
    %730 = vmatpush1.bf16.xpose.msra.mxu0 %v727
    %731 = vmatprep.subr.bf16.mxu0 0
    %732 = vmatpush1.bf16.xpose.msra.mxu0 0
    %733 = vmatprep.subr.bf16.mxu0 0
    %734 = vmatpush1.bf16.xpose.msra.mxu0 0
    %735 = vmatprep.subr.bf16.mxu0 0
    %736 = vmatpush1.bf16.xpose.msra.mxu0 0
    %737 = vmatprep.subr.bf16.mxu0 0
    %738 = vmatpush1.bf16.xpose.msra.mxu0 0
    %739 = vmatprep.subr.bf16.mxu0 0
    %740 = vmatpush1.bf16.xpose.msra.mxu0 0
    %741 = vmatprep.subr.bf16.mxu0 0
    %742 = vmatpush1.bf16.xpose.msra.mxu0 0
    %743 = vmatprep.subr.bf16.mxu0 0
    %744 = vmatpush1.bf16.xpose.msra.mxu0 0
    %745 = vmatprep.subr.bf16.mxu0 0
    %746 = vmatpush1.bf16.xpose.msra.mxu0 0
    %747 = vmatprep.subr.bf16.mxu0 0
    %748 = vmatpush1.bf16.xpose.msra.mxu0 0
    %749 = vmatprep.subr.bf16.mxu0 0
    %750 = vmatpush1.bf16.xpose.msra.mxu0 0
    %751 = vmatprep.subr.bf16.mxu0 0
    %752 = vmatpush1.bf16.xpose.msra.mxu0 0
    %753 = vmatprep.subr.bf16.mxu0 0
    %754 = vmatpush1.bf16.xpose.msra.mxu0 0
    %755 = vmatprep.subr.bf16.mxu0 0
    %756 = vmatpush1.bf16.xpose.msra.mxu0 0
    %757 = vmatprep.subr.bf16.mxu0 0
    %758 = vmatpush1.bf16.xpose.msra.mxu0 0
    %759 = vmatprep.subr.bf16.mxu0 0
    %760 = vmatpush1.bf16.xpose.msra.mxu0 0
    %761 = vmatprep.mubr.bf16.mxu0 0
    %762 = vmatmul.mubr.bf16.gmra.mrb[0].mxu0 %v724
    %v763 = vpop.f32.mrb[0].mxu0
    %v764 = vadd.f32 0.0, %v763
    %v765 = vpop.f32.mrb[0].mxu0
    %v766 = vpop.f32.mrb[0].mxu0
    %v767 = vpop.f32.mrb[0].mxu0
    %768 = vdwg.mxu0
    %769 = vrot.lane.b32.xlu0 %v176, 112
    %v770 = vpop.permute.xlu0 %769
    %771 = vrot.lane.b32.xlu0 %v176, 80
    %v772 = vpop.permute.xlu0 %771
    %v774 = vsel %vm180, %v770, 0
    %v777 = vsel %vm180, %v772, 0
    %779 = vmatprep.subr.bf16.mxu0 0
    %780 = vmatpush1.bf16.xpose.msra.mxu0 %v777
    %781 = vmatprep.subr.bf16.mxu0 0
    %782 = vmatpush1.bf16.xpose.msra.mxu0 0
    %783 = vmatprep.subr.bf16.mxu0 0
    %784 = vmatpush1.bf16.xpose.msra.mxu0 0
    %785 = vmatprep.subr.bf16.mxu0 0
    %786 = vmatpush1.bf16.xpose.msra.mxu0 0
    %787 = vmatprep.subr.bf16.mxu0 0
    %788 = vmatpush1.bf16.xpose.msra.mxu0 0
    %789 = vmatprep.subr.bf16.mxu0 0
    %790 = vmatpush1.bf16.xpose.msra.mxu0 0
    %791 = vmatprep.subr.bf16.mxu0 0
    %792 = vmatpush1.bf16.xpose.msra.mxu0 0
    %793 = vmatprep.subr.bf16.mxu0 0
    %794 = vmatpush1.bf16.xpose.msra.mxu0 0
    %795 = vmatprep.subr.bf16.mxu0 0
    %796 = vmatpush1.bf16.xpose.msra.mxu0 0
    %797 = vmatprep.subr.bf16.mxu0 0
    %798 = vmatpush1.bf16.xpose.msra.mxu0 0
    %799 = vmatprep.subr.bf16.mxu0 0
    %800 = vmatpush1.bf16.xpose.msra.mxu0 0
    %801 = vmatprep.subr.bf16.mxu0 0
    %802 = vmatpush1.bf16.xpose.msra.mxu0 0
    %803 = vmatprep.subr.bf16.mxu0 0
    %804 = vmatpush1.bf16.xpose.msra.mxu0 0
    %805 = vmatprep.subr.bf16.mxu0 0
    %806 = vmatpush1.bf16.xpose.msra.mxu0 0
    %807 = vmatprep.subr.bf16.mxu0 0
    %808 = vmatpush1.bf16.xpose.msra.mxu0 0
    %809 = vmatprep.subr.bf16.mxu0 0
    %810 = vmatpush1.bf16.xpose.msra.mxu0 0
    %811 = vmatprep.mubr.bf16.mxu0 0
    %812 = vmatmul.mubr.bf16.gmra.mrb[0].mxu0 %v774
    %v813 = vpop.f32.mrb[0].mxu0
    %v814 = vadd.f32 0.0, %v813
    %v815 = vpop.f32.mrb[0].mxu0
    %v816 = vpop.f32.mrb[0].mxu0
    %v817 = vpop.f32.mrb[0].mxu0
    %818 = vdwg.mxu0
    %v819 = vmul.f32 %v764, 0.35355338
    %v820 = vmul.f32 %v814, 0.35355338
    %v821 = vsel %vm180, %v819, -inf
    %822 = vmax.xlane.f32.xlu0 %v821
    %v823 = vpop.xlane.xlu0 %822
    %v824 = vsel %vm180, %v820, -inf
    %825 = vmax.xlane.f32.xlu0 %v824
    %v826 = vpop.xlane.xlu0 %825
    %v827 = vsub.f32 %v819, %v823
    %v828 = vsub.f32 %v820, %v826
    %v829 = vmul.f32 %v827, 1.442695
    %v830 = vpow.pop %v829
    %v831 = vmul.f32 %v828, 1.442695
    %v832 = vpow.pop %v831
    %v833 = vsel %vm180, %v830, 0.0
    %834 = vadd.xlane.f32.xlu0 %v833
    %v835 = vpop.xlane.xlu0 %834
    %v836 = vsel %vm180, %v832, 0.0
    %837 = vadd.xlane.f32.xlu0 %v836
    %v838 = vpop.xlane.xlu0 %837
    %v839 = vrcp.pop %v835
    %v840 = vrcp.pop %v838
    %v841 = vmul.f32 %v830, %v839
    %v842 = vmul.f32 %v832, %v840
    %v843 = vpack.c.bf16 %v841, %v841
    %v844 = vpack.c.bf16 %v842, %v842
    %845 = vrot.lane.b32.xlu0 %v175, 48
    %v846 = vpop.permute.xlu0 %845
    %v848 = vsel %vm180, %v843, 0
    %v851 = vsel %vm307, %v846, 0
    %853 = vmatprep.subr.bf16.mxu0 0
    %854 = vmatpush1.bf16.msra.mxu0 %v851
    %855 = vmatprep.subr.bf16.mxu0 0
    %856 = vmatpush1.bf16.msra.mxu0 0
    %857 = vmatprep.subr.bf16.mxu0 0
    %858 = vmatpush1.bf16.msra.mxu0 0
    %859 = vmatprep.subr.bf16.mxu0 0
    %860 = vmatpush1.bf16.msra.mxu0 0
    %861 = vmatprep.subr.bf16.mxu0 0
    %862 = vmatpush1.bf16.msra.mxu0 0
    %863 = vmatprep.subr.bf16.mxu0 0
    %864 = vmatpush1.bf16.msra.mxu0 0
    %865 = vmatprep.subr.bf16.mxu0 0
    %866 = vmatpush1.bf16.msra.mxu0 0
    %867 = vmatprep.subr.bf16.mxu0 0
    %868 = vmatpush1.bf16.msra.mxu0 0
    %869 = vmatprep.subr.bf16.mxu0 0
    %870 = vmatpush1.bf16.msra.mxu0 0
    %871 = vmatprep.subr.bf16.mxu0 0
    %872 = vmatpush1.bf16.msra.mxu0 0
    %873 = vmatprep.subr.bf16.mxu0 0
    %874 = vmatpush1.bf16.msra.mxu0 0
    %875 = vmatprep.subr.bf16.mxu0 0
    %876 = vmatpush1.bf16.msra.mxu0 0
    %877 = vmatprep.subr.bf16.mxu0 0
    %878 = vmatpush1.bf16.msra.mxu0 0
    %879 = vmatprep.subr.bf16.mxu0 0
    %880 = vmatpush1.bf16.msra.mxu0 0
    %881 = vmatprep.subr.bf16.mxu0 0
    %882 = vmatpush1.bf16.msra.mxu0 0
    %883 = vmatprep.subr.bf16.mxu0 0
    %884 = vmatpush1.bf16.msra.mxu0 0
    %885 = vmatprep.mubr.bf16.mxu0 0
    %886 = vmatmul.mubr.bf16.gmra.mrb[0].mxu0 %v848
    %v887 = vpop.f32.mrb[0].mxu0
    %v888 = vadd.f32 0.0, %v887
    %v889 = vpop.f32.mrb[0].mxu0
    %v890 = vpop.f32.mrb[0].mxu0
    %v891 = vpop.f32.mrb[0].mxu0
    %892 = vdwg.mxu0
    %893 = vrot.lane.b32.xlu0 %v176, 48
    %v894 = vpop.permute.xlu0 %893
    %v896 = vsel %vm180, %v844, 0
    %v899 = vsel %vm307, %v894, 0
    %901 = vmatprep.subr.bf16.mxu0 0
    %902 = vmatpush1.bf16.msra.mxu0 %v899
    %903 = vmatprep.subr.bf16.mxu0 0
    %904 = vmatpush1.bf16.msra.mxu0 0
    %905 = vmatprep.subr.bf16.mxu0 0
    %906 = vmatpush1.bf16.msra.mxu0 0
    %907 = vmatprep.subr.bf16.mxu0 0
    %908 = vmatpush1.bf16.msra.mxu0 0
    %909 = vmatprep.subr.bf16.mxu0 0
    %910 = vmatpush1.bf16.msra.mxu0 0
    %911 = vmatprep.subr.bf16.mxu0 0
    %912 = vmatpush1.bf16.msra.mxu0 0
    %913 = vmatprep.subr.bf16.mxu0 0
    %914 = vmatpush1.bf16.msra.mxu0 0
    %915 = vmatprep.subr.bf16.mxu0 0
    %916 = vmatpush1.bf16.msra.mxu0 0
    %917 = vmatprep.subr.bf16.mxu0 0
    %918 = vmatpush1.bf16.msra.mxu0 0
    %919 = vmatprep.subr.bf16.mxu0 0
    %920 = vmatpush1.bf16.msra.mxu0 0
    %921 = vmatprep.subr.bf16.mxu0 0
    %922 = vmatpush1.bf16.msra.mxu0 0
    %923 = vmatprep.subr.bf16.mxu0 0
    %924 = vmatpush1.bf16.msra.mxu0 0
    %925 = vmatprep.subr.bf16.mxu0 0
    %926 = vmatpush1.bf16.msra.mxu0 0
    %927 = vmatprep.subr.bf16.mxu0 0
    %928 = vmatpush1.bf16.msra.mxu0 0
    %929 = vmatprep.subr.bf16.mxu0 0
    %930 = vmatpush1.bf16.msra.mxu0 0
    %931 = vmatprep.subr.bf16.mxu0 0
    %932 = vmatpush1.bf16.msra.mxu0 0
    %933 = vmatprep.mubr.bf16.mxu0 0
    %934 = vmatmul.mubr.bf16.gmra.mrb[0].mxu0 %v896
    %v935 = vpop.f32.mrb[0].mxu0
    %v936 = vadd.f32 0.0, %v935
    %v937 = vpop.f32.mrb[0].mxu0
    %v938 = vpop.f32.mrb[0].mxu0
    %v939 = vpop.f32.mrb[0].mxu0
    %940 = vdwg.mxu0
    %v941 = vpack.c.bf16 %v936, %v888
    %v942 = vld [vmem:[%s4 + $0x8] sm:$0xf]
    %v944 = vsel %vm180, %v941, 0
    %v947 = vsel %vm307, %v942, 0
    %949 = vmatprep.subr.bf16.mxu0 0
    %950 = vmatpush1.bf16.msra.mxu0 %v947
    %951 = vmatprep.subr.bf16.mxu0 0
    %952 = vmatpush1.bf16.msra.mxu0 0
    %953 = vmatprep.subr.bf16.mxu0 0
    %954 = vmatpush1.bf16.msra.mxu0 0
    %955 = vmatprep.subr.bf16.mxu0 0
    %956 = vmatpush1.bf16.msra.mxu0 0
    %957 = vmatprep.subr.bf16.mxu0 0
    %958 = vmatpush1.bf16.msra.mxu0 0
    %959 = vmatprep.subr.bf16.mxu0 0
    %960 = vmatpush1.bf16.msra.mxu0 0
    %961 = vmatprep.subr.bf16.mxu0 0
    %962 = vmatpush1.bf16.msra.mxu0 0
    %963 = vmatprep.subr.bf16.mxu0 0
    %964 = vmatpush1.bf16.msra.mxu0 0
    %965 = vmatprep.subr.bf16.mxu0 0
    %966 = vmatpush1.bf16.msra.mxu0 0
    %967 = vmatprep.subr.bf16.mxu0 0
    %968 = vmatpush1.bf16.msra.mxu0 0
    %969 = vmatprep.subr.bf16.mxu0 0
    %970 = vmatpush1.bf16.msra.mxu0 0
    %971 = vmatprep.subr.bf16.mxu0 0
    %972 = vmatpush1.bf16.msra.mxu0 0
    %973 = vmatprep.subr.bf16.mxu0 0
    %974 = vmatpush1.bf16.msra.mxu0 0
    %975 = vmatprep.subr.bf16.mxu0 0
    %976 = vmatpush1.bf16.msra.mxu0 0
    %977 = vmatprep.subr.bf16.mxu0 0
    %978 = vmatpush1.bf16.msra.mxu0 0
    %979 = vmatprep.subr.bf16.mxu0 0
    %980 = vmatpush1.bf16.msra.mxu0 0
    %981 = vmatprep.mubr.bf16.mxu0 0
    %982 = vmatmul.mubr.bf16.gmra.mrb[0].mxu0 %v944
    %v983 = vpop.f32.mrb[0].mxu0
    %v984 = vadd.f32 0.0, %v983
    %v985 = vpop.f32.mrb[0].mxu0
    %v986 = vpop.f32.mrb[0].mxu0
    %v987 = vadd.f32 0.0, %v986
    %v988 = vpop.f32.mrb[0].mxu0
    %989 = vdwg.mxu0
    %v990 = vadd.f32 %v713, %v984
    %v991 = vadd.f32 %v716, %v987
    %992 = vrot.lane.b32.xlu0 %v175, 104
    %v993 = vpop.permute.xlu0 %992
    %994 = vrot.lane.b32.xlu0 %v175, 72
    %v995 = vpop.permute.xlu0 %994
    %v997 = vsel %vm180, %v993, 0
    %v1000 = vsel %vm180, %v995, 0
    %1002 = vmatprep.subr.bf16.mxu0 0
    %1003 = vmatpush1.bf16.xpose.msra.mxu0 %v1000
    %1004 = vmatprep.subr.bf16.mxu0 0
    %1005 = vmatpush1.bf16.xpose.msra.mxu0 0
    %1006 = vmatprep.subr.bf16.mxu0 0
    %1007 = vmatpush1.bf16.xpose.msra.mxu0 0
    %1008 = vmatprep.subr.bf16.mxu0 0
    %1009 = vmatpush1.bf16.xpose.msra.mxu0 0
    %1010 = vmatprep.subr.bf16.mxu0 0
    %1011 = vmatpush1.bf16.xpose.msra.mxu0 0
    %1012 = vmatprep.subr.bf16.mxu0 0
    %1013 = vmatpush1.bf16.xpose.msra.mxu0 0
    %1014 = vmatprep.subr.bf16.mxu0 0
    %1015 = vmatpush1.bf16.xpose.msra.mxu0 0
    %1016 = vmatprep.subr.bf16.mxu0 0
    %1017 = vmatpush1.bf16.xpose.msra.mxu0 0
    %1018 = vmatprep.subr.bf16.mxu0 0
    %1019 = vmatpush1.bf16.xpose.msra.mxu0 0
    %1020 = vmatprep.subr.bf16.mxu0 0
    %1021 = vmatpush1.bf16.xpose.msra.mxu0 0
    %1022 = vmatprep.subr.bf16.mxu0 0
    %1023 = vmatpush1.bf16.xpose.msra.mxu0 0
    %1024 = vmatprep.subr.bf16.mxu0 0
    %1025 = vmatpush1.bf16.xpose.msra.mxu0 0
    %1026 = vmatprep.subr.bf16.mxu0 0
    %1027 = vmatpush1.bf16.xpose.msra.mxu0 0
    %1028 = vmatprep.subr.bf16.mxu0 0
    %1029 = vmatpush1.bf16.xpose.msra.mxu0 0
    %1030 = vmatprep.subr.bf16.mxu0 0
    %1031 = vmatpush1.bf16.xpose.msra.mxu0 0
    %1032 = vmatprep.subr.bf16.mxu0 0
    %1033 = vmatpush1.bf16.xpose.msra.mxu0 0
    %1034 = vmatprep.mubr.bf16.mxu0 0
    %1035 = vmatmul.mubr.bf16.gmra.mrb[0].mxu0 %v997
    %v1036 = vpop.f32.mrb[0].mxu0
    %v1037 = vadd.f32 0.0, %v1036
    %v1038 = vpop.f32.mrb[0].mxu0
    %v1039 = vpop.f32.mrb[0].mxu0
    %v1040 = vpop.f32.mrb[0].mxu0
    %1041 = vdwg.mxu0
    %1042 = vrot.lane.b32.xlu0 %v176, 104
    %v1043 = vpop.permute.xlu0 %1042
    %1044 = vrot.lane.b32.xlu0 %v176, 72
    %v1045 = vpop.permute.xlu0 %1044
    %v1047 = vsel %vm180, %v1043, 0
    %v1050 = vsel %vm180, %v1045, 0
    %1052 = vmatprep.subr.bf16.mxu0 0
    %1053 = vmatpush1.bf16.xpose.msra.mxu0 %v1050
    %1054 = vmatprep.subr.bf16.mxu0 0
    %1055 = vmatpush1.bf16.xpose.msra.mxu0 0
    %1056 = vmatprep.subr.bf16.mxu0 0
    %1057 = vmatpush1.bf16.xpose.msra.mxu0 0
    %1058 = vmatprep.subr.bf16.mxu0 0
    %1059 = vmatpush1.bf16.xpose.msra.mxu0 0
    %1060 = vmatprep.subr.bf16.mxu0 0
    %1061 = vmatpush1.bf16.xpose.msra.mxu0 0
    %1062 = vmatprep.subr.bf16.mxu0 0
    %1063 = vmatpush1.bf16.xpose.msra.mxu0 0
    %1064 = vmatprep.subr.bf16.mxu0 0
    %1065 = vmatpush1.bf16.xpose.msra.mxu0 0
    %1066 = vmatprep.subr.bf16.mxu0 0
    %1067 = vmatpush1.bf16.xpose.msra.mxu0 0
    %1068 = vmatprep.subr.bf16.mxu0 0
    %1069 = vmatpush1.bf16.xpose.msra.mxu0 0
    %1070 = vmatprep.subr.bf16.mxu0 0
    %1071 = vmatpush1.bf16.xpose.msra.mxu0 0
    %1072 = vmatprep.subr.bf16.mxu0 0
    %1073 = vmatpush1.bf16.xpose.msra.mxu0 0
    %1074 = vmatprep.subr.bf16.mxu0 0
    %1075 = vmatpush1.bf16.xpose.msra.mxu0 0
    %1076 = vmatprep.subr.bf16.mxu0 0
    %1077 = vmatpush1.bf16.xpose.msra.mxu0 0
    %1078 = vmatprep.subr.bf16.mxu0 0
    %1079 = vmatpush1.bf16.xpose.msra.mxu0 0
    %1080 = vmatprep.subr.bf16.mxu0 0
    %1081 = vmatpush1.bf16.xpose.msra.mxu0 0
    %1082 = vmatprep.subr.bf16.mxu0 0
    %1083 = vmatpush1.bf16.xpose.msra.mxu0 0
    %1084 = vmatprep.mubr.bf16.mxu0 0
    %1085 = vmatmul.mubr.bf16.gmra.mrb[0].mxu0 %v1047
    %v1086 = vpop.f32.mrb[0].mxu0
    %v1087 = vadd.f32 0.0, %v1086
    %v1088 = vpop.f32.mrb[0].mxu0
    %v1089 = vpop.f32.mrb[0].mxu0
    %v1090 = vpop.f32.mrb[0].mxu0
    %1091 = vdwg.mxu0
    %v1092 = vmul.f32 %v1037, 0.35355338
    %v1093 = vmul.f32 %v1087, 0.35355338
    %v1094 = vsel %vm180, %v1092, -inf
    %1095 = vmax.xlane.f32.xlu0 %v1094
    %v1096 = vpop.xlane.xlu0 %1095
    %v1097 = vsel %vm180, %v1093, -inf
    %1098 = vmax.xlane.f32.xlu0 %v1097
    %v1099 = vpop.xlane.xlu0 %1098
    %v1100 = vsub.f32 %v1092, %v1096
    %v1101 = vsub.f32 %v1093, %v1099
    %v1102 = vmul.f32 %v1100, 1.442695
    %v1103 = vpow.pop %v1102
    %v1104 = vmul.f32 %v1101, 1.442695
    %v1105 = vpow.pop %v1104
    %v1106 = vsel %vm180, %v1103, 0.0
    %1107 = vadd.xlane.f32.xlu0 %v1106
    %v1108 = vpop.xlane.xlu0 %1107
    %v1109 = vsel %vm180, %v1105, 0.0
    %1110 = vadd.xlane.f32.xlu0 %v1109
    %v1111 = vpop.xlane.xlu0 %1110
    %v1112 = vrcp.pop %v1108
    %v1113 = vrcp.pop %v1111
    %v1114 = vmul.f32 %v1103, %v1112
    %v1115 = vmul.f32 %v1105, %v1113
    %v1116 = vpack.c.bf16 %v1114, %v1114
    %v1117 = vpack.c.bf16 %v1115, %v1115
    %1118 = vrot.lane.b32.xlu0 %v175, 40
    %v1119 = vpop.permute.xlu0 %1118
    %v1121 = vsel %vm180, %v1116, 0
    %v1124 = vsel %vm307, %v1119, 0
    %1126 = vmatprep.subr.bf16.mxu0 0
    %1127 = vmatpush1.bf16.msra.mxu0 %v1124
    %1128 = vmatprep.subr.bf16.mxu0 0
    %1129 = vmatpush1.bf16.msra.mxu0 0
    %1130 = vmatprep.subr.bf16.mxu0 0
    %1131 = vmatpush1.bf16.msra.mxu0 0
    %1132 = vmatprep.subr.bf16.mxu0 0
    %1133 = vmatpush1.bf16.msra.mxu0 0
    %1134 = vmatprep.subr.bf16.mxu0 0
    %1135 = vmatpush1.bf16.msra.mxu0 0
    %1136 = vmatprep.subr.bf16.mxu0 0
    %1137 = vmatpush1.bf16.msra.mxu0 0
    %1138 = vmatprep.subr.bf16.mxu0 0
    %1139 = vmatpush1.bf16.msra.mxu0 0
    %1140 = vmatprep.subr.bf16.mxu0 0
    %1141 = vmatpush1.bf16.msra.mxu0 0
    %1142 = vmatprep.subr.bf16.mxu0 0
    %1143 = vmatpush1.bf16.msra.mxu0 0
    %1144 = vmatprep.subr.bf16.mxu0 0
    %1145 = vmatpush1.bf16.msra.mxu0 0
    %1146 = vmatprep.subr.bf16.mxu0 0
    %1147 = vmatpush1.bf16.msra.mxu0 0
    %1148 = vmatprep.subr.bf16.mxu0 0
    %1149 = vmatpush1.bf16.msra.mxu0 0
    %1150 = vmatprep.subr.bf16.mxu0 0
    %1151 = vmatpush1.bf16.msra.mxu0 0
    %1152 = vmatprep.subr.bf16.mxu0 0
    %1153 = vmatpush1.bf16.msra.mxu0 0
    %1154 = vmatprep.subr.bf16.mxu0 0
    %1155 = vmatpush1.bf16.msra.mxu0 0
    %1156 = vmatprep.subr.bf16.mxu0 0
    %1157 = vmatpush1.bf16.msra.mxu0 0
    %1158 = vmatprep.mubr.bf16.mxu0 0
    %1159 = vmatmul.mubr.bf16.gmra.mrb[0].mxu0 %v1121
    %v1160 = vpop.f32.mrb[0].mxu0
    %v1161 = vadd.f32 0.0, %v1160
    %v1162 = vpop.f32.mrb[0].mxu0
    %v1163 = vpop.f32.mrb[0].mxu0
    %v1164 = vpop.f32.mrb[0].mxu0
    %1165 = vdwg.mxu0
    %1166 = vrot.lane.b32.xlu0 %v176, 40
    %v1167 = vpop.permute.xlu0 %1166
    %v1169 = vsel %vm180, %v1117, 0
    %v1172 = vsel %vm307, %v1167, 0
    %1174 = vmatprep.subr.bf16.mxu0 0
    %1175 = vmatpush1.bf16.msra.mxu0 %v1172
    %1176 = vmatprep.subr.bf16.mxu0 0
    %1177 = vmatpush1.bf16.msra.mxu0 0
    %1178 = vmatprep.subr.bf16.mxu0 0
    %1179 = vmatpush1.bf16.msra.mxu0 0
    %1180 = vmatprep.subr.bf16.mxu0 0
    %1181 = vmatpush1.bf16.msra.mxu0 0
    %1182 = vmatprep.subr.bf16.mxu0 0
    %1183 = vmatpush1.bf16.msra.mxu0 0
    %1184 = vmatprep.subr.bf16.mxu0 0
    %1185 = vmatpush1.bf16.msra.mxu0 0
    %1186 = vmatprep.subr.bf16.mxu0 0
    %1187 = vmatpush1.bf16.msra.mxu0 0
    %1188 = vmatprep.subr.bf16.mxu0 0
    %1189 = vmatpush1.bf16.msra.mxu0 0
    %1190 = vmatprep.subr.bf16.mxu0 0
    %1191 = vmatpush1.bf16.msra.mxu0 0
    %1192 = vmatprep.subr.bf16.mxu0 0
    %1193 = vmatpush1.bf16.msra.mxu0 0
    %1194 = vmatprep.subr.bf16.mxu0 0
    %1195 = vmatpush1.bf16.msra.mxu0 0
    %1196 = vmatprep.subr.bf16.mxu0 0
    %1197 = vmatpush1.bf16.msra.mxu0 0
    %1198 = vmatprep.subr.bf16.mxu0 0
    %1199 = vmatpush1.bf16.msra.mxu0 0
    %1200 = vmatprep.subr.bf16.mxu0 0
    %1201 = vmatpush1.bf16.msra.mxu0 0
    %1202 = vmatprep.subr.bf16.mxu0 0
    %1203 = vmatpush1.bf16.msra.mxu0 0
    %1204 = vmatprep.subr.bf16.mxu0 0
    %1205 = vmatpush1.bf16.msra.mxu0 0
    %1206 = vmatprep.mubr.bf16.mxu0 0
    %1207 = vmatmul.mubr.bf16.gmra.mrb[0].mxu0 %v1169
    %v1208 = vpop.f32.mrb[0].mxu0
    %v1209 = vadd.f32 0.0, %v1208
    %v1210 = vpop.f32.mrb[0].mxu0
    %v1211 = vpop.f32.mrb[0].mxu0
    %v1212 = vpop.f32.mrb[0].mxu0
    %1213 = vdwg.mxu0
    %v1214 = vpack.c.bf16 %v1209, %v1161
    %v1215 = vld [vmem:[%s4 + $0xc] sm:$0xf]
    %v1217 = vsel %vm180, %v1214, 0
    %v1220 = vsel %vm307, %v1215, 0
    %1222 = vmatprep.subr.bf16.mxu0 0
    %1223 = vmatpush1.bf16.msra.mxu0 %v1220
    %1224 = vmatprep.subr.bf16.mxu0 0
    %1225 = vmatpush1.bf16.msra.mxu0 0
    %1226 = vmatprep.subr.bf16.mxu0 0
    %1227 = vmatpush1.bf16.msra.mxu0 0
    %1228 = vmatprep.subr.bf16.mxu0 0
    %1229 = vmatpush1.bf16.msra.mxu0 0
    %1230 = vmatprep.subr.bf16.mxu0 0
    %1231 = vmatpush1.bf16.msra.mxu0 0
    %1232 = vmatprep.subr.bf16.mxu0 0
    %1233 = vmatpush1.bf16.msra.mxu0 0
    %1234 = vmatprep.subr.bf16.mxu0 0
    %1235 = vmatpush1.bf16.msra.mxu0 0
    %1236 = vmatprep.subr.bf16.mxu0 0
    %1237 = vmatpush1.bf16.msra.mxu0 0
    %1238 = vmatprep.subr.bf16.mxu0 0
    %1239 = vmatpush1.bf16.msra.mxu0 0
    %1240 = vmatprep.subr.bf16.mxu0 0
    %1241 = vmatpush1.bf16.msra.mxu0 0
    %1242 = vmatprep.subr.bf16.mxu0 0
    %1243 = vmatpush1.bf16.msra.mxu0 0
    %1244 = vmatprep.subr.bf16.mxu0 0
    %1245 = vmatpush1.bf16.msra.mxu0 0
    %1246 = vmatprep.subr.bf16.mxu0 0
    %1247 = vmatpush1.bf16.msra.mxu0 0
    %1248 = vmatprep.subr.bf16.mxu0 0
    %1249 = vmatpush1.bf16.msra.mxu0 0
    %1250 = vmatprep.subr.bf16.mxu0 0
    %1251 = vmatpush1.bf16.msra.mxu0 0
    %1252 = vmatprep.subr.bf16.mxu0 0
    %1253 = vmatpush1.bf16.msra.mxu0 0
    %1254 = vmatprep.mubr.bf16.mxu0 0
    %1255 = vmatmul.mubr.bf16.gmra.mrb[0].mxu0 %v1217
    %v1256 = vpop.f32.mrb[0].mxu0
    %v1257 = vadd.f32 0.0, %v1256
    %v1258 = vpop.f32.mrb[0].mxu0
    %v1259 = vpop.f32.mrb[0].mxu0
    %v1260 = vadd.f32 0.0, %v1259
    %v1261 = vpop.f32.mrb[0].mxu0
    %1262 = vdwg.mxu0
    %v1263 = vadd.f32 %v990, %v1257
    %v1264 = vadd.f32 %v991, %v1260
    %v1265 = vld [vmem:[%s5] sm:$0x1]
    %v1267 = vlaneseq
    %v1268 = vshrl.u32 %v1267, 7
    %v1269 = vsub.s32 0, %v1268
    %v1270 = vrot.slane %v1265, %v1269
    %v1272 = vadd.f32 %v1263, %v1270
    %v1273 = vadd.f32 %v1264, %v1270
    %v1276 = vlaneseq
    %v1277 = vshrl.u32 %v1276, 7
    %v1278 = vsub.s32 0, %v1277
    %v1279 = vrot.slane %v41, %v1278
    %v1280 = vlaneseq
    %v1281 = vshrl.u32 %v1280, 7
    %v1282 = vsub.s32 0, %v1281
    %v1283 = vrot.slane %v47, %v1282
    %v1286 = vmul.f32 %v1279, %v1272
    %v1287 = vmul.f32 %v1283, %v1273
    %v1288 = vadd.f32 %v37, %v1286
    %v1289 = vadd.f32 %v38, %v1287
    %v1290 = vsel %vm51, %v1288, 0.0
    %1291 = vadd.xlane.f32.xlu0 %v1290
    %v1292 = vpop.xlane.xlu0 %1291
    %v1293 = vsel %vm51, %v1289, 0.0
    %1294 = vadd.xlane.f32.xlu0 %v1293
    %v1295 = vpop.xlane.xlu0 %1294
    %v1296 = vmul.f32 %v1292, %v58
    %v1297 = vmul.f32 %v1295, %v58
    %v1298 = vsub.f32 %v1288, %v1296
    %v1299 = vsub.f32 %v1289, %v1297
    %v1300 = vmul.f32 %v1298, %v1298
    %v1301 = vmul.f32 %v1299, %v1299
    %v1302 = vsel %vm51, %v1300, 0.0
    %1303 = vadd.xlane.f32.xlu0 %v1302
    %v1304 = vpop.xlane.xlu0 %1303
    %v1305 = vsel %vm51, %v1301, 0.0
    %1306 = vadd.xlane.f32.xlu0 %v1305
    %v1307 = vpop.xlane.xlu0 %1306
    %v1308 = vmul.f32 %v1304, %v58
    %v1309 = vmul.f32 %v1307, %v58
    %v1310 = vadd.f32 %v1308, 1e-06
    %v1311 = vadd.f32 %v1309, 1e-06
    %v1312 = vrsqrt.pop %v1310
    %v1313 = vrsqrt.pop %v1311
    %v1314 = vmul.f32 %v1298, %v1312
    %v1315 = vmul.f32 %v1299, %v1313
    %v1318 = vlaneseq
    %v1319 = vshrl.u32 %v1318, 7
    %v1320 = vsub.s32 0, %v1319
    %v1321 = vrot.slane %v42, %v1320
    %v1322 = vlaneseq
    %v1323 = vshrl.u32 %v1322, 7
    %v1324 = vsub.s32 0, %v1323
    %v1325 = vrot.slane %v48, %v1324
    %v1328 = vmul.f32 %v1321, %v1314
    %v1329 = vmul.f32 %v1325, %v1315
    %v1332 = vlaneseq
    %v1333 = vshrl.u32 %v1332, 7
    %v1334 = vsub.s32 0, %v1333
    %v1335 = vrot.slane %v43, %v1334
    %v1336 = vlaneseq
    %v1337 = vshrl.u32 %v1336, 7
    %v1338 = vsub.s32 0, %v1337
    %v1339 = vrot.slane %v49, %v1338
    %v1342 = vadd.f32 %v1328, %v1335
    %v1343 = vadd.f32 %v1329, %v1339
    %v1344 = vpack.c.bf16 %v1343, %v1342
    %v1345 = vld [vmem:[%s6] sm:$0xf]
    %v1346 = vld [vmem:[%s6 + $0x4] sm:$0xf]
    %v1347 = vld [vmem:[%s6 + $0x8] sm:$0xf]
    %v1348 = vld [vmem:[%s6 + $0xc] sm:$0xf]
    %v1349 = vld [vmem:[%s7] sm:$0x1]
    %v1351 = vlaneseq
    %v1352 = vshrl.u32 %v1351, 7
    %v1353 = vsub.s32 0, %v1352
    %v1354 = vrot.slane %v1349, %v1353
    %v1360 = vunpack.c.l.b16 %v1345
    %v1361 = vunpack.c.l.b16 %v1346
    %v1362 = vunpack.c.l.b16 %v1347
    %v1363 = vunpack.c.l.b16 %v1348
    %v1364 = vpack.c.b16 %v1361, %v1360
    %v1365 = vpack.c.b16 %v1363, %v1362
    %v1369 = vsel %vm51, %v1344, 0
    %1371 = vmatprep.subr.bf16.mxu0 0
    %1372 = vmatpush1.bf16.msra.mxu0 %v1364
    %1373 = vmatprep.subr.bf16.mxu0 0
    %1374 = vmatpush1.bf16.msra.mxu0 %v1365
    %1375 = vmatprep.subr.bf16.mxu0 0
    %1376 = vmatpush1.bf16.msra.mxu0 0
    %1377 = vmatprep.subr.bf16.mxu0 0
    %1378 = vmatpush1.bf16.msra.mxu0 0
    %1379 = vmatprep.subr.bf16.mxu0 0
    %1380 = vmatpush1.bf16.msra.mxu0 0
    %1381 = vmatprep.subr.bf16.mxu0 0
    %1382 = vmatpush1.bf16.msra.mxu0 0
    %1383 = vmatprep.subr.bf16.mxu0 0
    %1384 = vmatpush1.bf16.msra.mxu0 0
    %1385 = vmatprep.subr.bf16.mxu0 0
    %1386 = vmatpush1.bf16.msra.mxu0 0
    %1387 = vmatprep.subr.bf16.mxu0 0
    %1388 = vmatpush1.bf16.msra.mxu0 0
    %1389 = vmatprep.subr.bf16.mxu0 0
    %1390 = vmatpush1.bf16.msra.mxu0 0
    %1391 = vmatprep.subr.bf16.mxu0 0
    %1392 = vmatpush1.bf16.msra.mxu0 0
    %1393 = vmatprep.subr.bf16.mxu0 0
    %1394 = vmatpush1.bf16.msra.mxu0 0
    %1395 = vmatprep.subr.bf16.mxu0 0
    %1396 = vmatpush1.bf16.msra.mxu0 0
    %1397 = vmatprep.subr.bf16.mxu0 0
    %1398 = vmatpush1.bf16.msra.mxu0 0
    %1399 = vmatprep.subr.bf16.mxu0 0
    %1400 = vmatpush1.bf16.msra.mxu0 0
    %1401 = vmatprep.subr.bf16.mxu0 0
    %1402 = vmatpush1.bf16.msra.mxu0 0
    %1403 = vmatprep.mubr.bf16.mxu0 0
    %1404 = vmatmul.mubr.bf16.gmra.mrb[0].mxu0 %v1369
    %v1405 = vpop.f32.mrb[0].mxu0
    %v1406 = vadd.f32 %v1354, %v1405
    %v1407 = vpop.f32.mrb[0].mxu0
    %v1408 = vpop.f32.mrb[0].mxu0
    %v1409 = vadd.f32 %v1354, %v1408
    %v1410 = vpop.f32.mrb[0].mxu0
    %1411 = vdwg.mxu0
    %v1412 = vmul.f32 %v1406, 0.5
    %v1413 = vmul.f32 %v1409, 0.5
    %v1414 = vmul.f32 %v1406, 0.044715
    %v1415 = vmul.f32 %v1409, 0.044715
    %v1416 = vmul.f32 %v1414, %v1406
    %v1417 = vmul.f32 %v1415, %v1409
    %v1418 = vmul.f32 %v1416, %v1406
    %v1419 = vmul.f32 %v1417, %v1409
    %v1420 = vadd.f32 %v1406, %v1418
    %v1421 = vadd.f32 %v1409, %v1419
    %v1422 = vmul.f32 %v1420, 0.7978846
    %v1423 = vmul.f32 %v1421, 0.7978846
    %v1424 = vtanh.pop %v1422
    %v1425 = vtanh.pop %v1423
    %v1426 = vadd.f32 %v1424, 1.0
    %v1427 = vadd.f32 %v1425, 1.0
    %v1428 = vmul.f32 %v1412, %v1426
    %v1429 = vmul.f32 %v1413, %v1427
    %v1430 = vpack.c.bf16 %v1429, %v1428
    %v1431 = vld [vmem:[%s8] sm:$0xf]
    %v1432 = vld [vmem:[%s8 + $0x4] sm:$0xf]
    %v1433 = vld [vmem:[%s8 + $0x8] sm:$0xf]
    %v1434 = vld [vmem:[%s8 + $0xc] sm:$0xf]
    %v1435 = vld [vmem:[%s8 + $0x10] sm:$0xf]
    %v1436 = vld [vmem:[%s8 + $0x14] sm:$0xf]
    %v1437 = vld [vmem:[%s8 + $0x18] sm:$0xf]
    %v1438 = vld [vmem:[%s8 + $0x1c] sm:$0xf]
    %v1439 = vld [vmem:[%s8 + $0x20] sm:$0xf]
    %v1440 = vld [vmem:[%s8 + $0x24] sm:$0xf]
    %v1441 = vld [vmem:[%s8 + $0x28] sm:$0xf]
    %v1442 = vld [vmem:[%s8 + $0x2c] sm:$0xf]
    %v1443 = vld [vmem:[%s8 + $0x30] sm:$0xf]
    %v1444 = vld [vmem:[%s8 + $0x34] sm:$0xf]
    %v1445 = vld [vmem:[%s8 + $0x38] sm:$0xf]
    %v1446 = vld [vmem:[%s8 + $0x3c] sm:$0xf]
    %v1447 = vld [vmem:[%s9] sm:$0x1]
    %v1449 = vlaneseq
    %v1450 = vshrl.u32 %v1449, 7
    %v1451 = vsub.s32 0, %v1450
    %v1452 = vrot.slane %v1447, %v1451
    %v1470 = vunpack.c.l.b16 %v1431
    %v1471 = vunpack.c.l.b16 %v1432
    %v1472 = vunpack.c.l.b16 %v1433
    %v1473 = vunpack.c.l.b16 %v1434
    %v1474 = vunpack.c.l.b16 %v1435
    %v1475 = vunpack.c.l.b16 %v1436
    %v1476 = vunpack.c.l.b16 %v1437
    %v1477 = vunpack.c.l.b16 %v1438
    %v1478 = vunpack.c.l.b16 %v1439
    %v1479 = vunpack.c.l.b16 %v1440
    %v1480 = vunpack.c.l.b16 %v1441
    %v1481 = vunpack.c.l.b16 %v1442
    %v1482 = vunpack.c.l.b16 %v1443
    %v1483 = vunpack.c.l.b16 %v1444
    %v1484 = vunpack.c.l.b16 %v1445
    %v1485 = vunpack.c.l.b16 %v1446
    %v1486 = vpack.c.b16 %v1471, %v1470
    %v1487 = vpack.c.b16 %v1473, %v1472
    %v1488 = vpack.c.b16 %v1475, %v1474
    %v1489 = vpack.c.b16 %v1477, %v1476
    %v1490 = vpack.c.b16 %v1479, %v1478
    %v1491 = vpack.c.b16 %v1481, %v1480
    %v1492 = vpack.c.b16 %v1483, %v1482
    %v1493 = vpack.c.b16 %v1485, %v1484
    %1502 = vmatprep.subr.bf16.mxu0 0
    %1503 = vmatpush1.bf16.msra.mxu0 %v1486
    %1504 = vmatprep.subr.bf16.mxu0 0
    %1505 = vmatpush1.bf16.msra.mxu0 %v1487
    %1506 = vmatprep.subr.bf16.mxu0 0
    %1507 = vmatpush1.bf16.msra.mxu0 %v1488
    %1508 = vmatprep.subr.bf16.mxu0 0
    %1509 = vmatpush1.bf16.msra.mxu0 %v1489
    %1510 = vmatprep.subr.bf16.mxu0 0
    %1511 = vmatpush1.bf16.msra.mxu0 %v1490
    %1512 = vmatprep.subr.bf16.mxu0 0
    %1513 = vmatpush1.bf16.msra.mxu0 %v1491
    %1514 = vmatprep.subr.bf16.mxu0 0
    %1515 = vmatpush1.bf16.msra.mxu0 %v1492
    %1516 = vmatprep.subr.bf16.mxu0 0
    %1517 = vmatpush1.bf16.msra.mxu0 %v1493
    %1518 = vmatprep.subr.bf16.mxu0 0
    %1519 = vmatpush1.bf16.msra.mxu0 0
    %1520 = vmatprep.subr.bf16.mxu0 0
    %1521 = vmatpush1.bf16.msra.mxu0 0
    %1522 = vmatprep.subr.bf16.mxu0 0
    %1523 = vmatpush1.bf16.msra.mxu0 0
    %1524 = vmatprep.subr.bf16.mxu0 0
    %1525 = vmatpush1.bf16.msra.mxu0 0
    %1526 = vmatprep.subr.bf16.mxu0 0
    %1527 = vmatpush1.bf16.msra.mxu0 0
    %1528 = vmatprep.subr.bf16.mxu0 0
    %1529 = vmatpush1.bf16.msra.mxu0 0
    %1530 = vmatprep.subr.bf16.mxu0 0
    %1531 = vmatpush1.bf16.msra.mxu0 0
    %1532 = vmatprep.subr.bf16.mxu0 0
    %1533 = vmatpush1.bf16.msra.mxu0 0
    %1534 = vmatprep.mubr.bf16.mxu0 0
    %1535 = vmatmul.mubr.bf16.gmra.mrb[0].mxu0 %v1430
    %v1536 = vpop.f32.mrb[0].mxu0
    %v1537 = vadd.f32 %v1452, %v1536
    %v1538 = vpop.f32.mrb[0].mxu0
    %v1539 = vpop.f32.mrb[0].mxu0
    %v1540 = vadd.f32 %v1452, %v1539
    %v1541 = vpop.f32.mrb[0].mxu0
    %1542 = vdwg.mxu0
    %v1545 = vlaneseq
    %v1546 = vshrl.u32 %v1545, 7
    %v1547 = vsub.s32 0, %v1546
    %v1548 = vrot.slane %v44, %v1547
    %v1549 = vlaneseq
    %v1550 = vshrl.u32 %v1549, 7
    %v1551 = vsub.s32 0, %v1550
    %v1552 = vrot.slane %v50, %v1551
    %v1555 = vmul.f32 %v1548, %v1537
    %v1556 = vmul.f32 %v1552, %v1540
    %v1557 = vadd.f32 %v1288, %v1555
    %v1558 = vadd.f32 %v1289, %v1556
    %1559 = vst.msk [vmem:[#allocation2] sm:$0xff] %vm51, %v1557
    %1560 = vst.msk [vmem:[#allocation2 + $0x8] sm:$0xff] %vm51, %v1558
    // Predicated region
    $region42: #{tpu_custom_call.1} parent=1 // pred_check
      _
    $region43: #{tpu_custom_call.1} parent=1 // pred_check_branch
      %1562 = sbr.rel (0) target = $region45
    $region44: #{tpu_custom_call.1} parent=1 // pred_region
      %s1564 = ssub.s32 256, 256
      %1565 = vsyncadd [#allocation3], %s1564
      %s1566 = sshll.u32 [#allocation2], 4
      %s1567 = int_to_ptr.vmem [resolvable:$true] %s1566
      %1572 = dma.vmem_to_hbm [thread:$0]  %s1567, 256, %s10, [#allocation3], 128, 128, 8
    $region45: #{tpu_custom_call.1} parent=1 // pred_fallthru
      _
    // Predicated region
    $region46: #{tpu_custom_call.1} parent=1 // pred_check
      _
    $region47: #{tpu_custom_call.1} parent=1 // pred_check_branch
      %1574 = sbr.rel (0) target = $region49
    $region48: #{tpu_custom_call.1} parent=1 // pred_region
      %1575 = dma.done [#allocation3], 256
    $region49: #{tpu_custom_call.1} parent=1 // pred_fallthru
      _
    %1576 = vsyncpa [#allocation3], 1

</llo_original>
